<compile_context>
chip_gen: v6e
topology: v6e:2x2x1
jax: 0.10.0
libtpu: 0.0.40
codegen_flags: <defaults>
</compile_context>

<pallas_src>
import jax
import jax.numpy as jnp
from jax import lax
from jax.experimental import pallas as pl
from jax.experimental.pallas import tpu as pltpu

EPS = 1e-5      # nn.GroupNorm default eps
LANE = 128      # TPU lane width; channel dims are padded to this in the wrapper


def _instance_norm(h, gamma, beta):
    """h: (B, HW, C) f32; per-sample per-channel stats over the spatial axis.

    One-pass variance saves a full elementwise pass per norm.  Zero-padded
    channels stay exactly zero because gamma == beta == 0 there.
    """
    mu = jnp.mean(h, axis=1, keepdims=True)
    var = jnp.mean(h * h, axis=1, keepdims=True) - mu * mu
    var = jnp.maximum(var, 0.0)          # guard tiny negative from cancellation
    return (h - mu) * lax.rsqrt(var + EPS) * gamma + beta


def bottleneck_kernel(x_ref, w1_ref, g1_ref, b1_ref,
                      w2_ref, g2_ref, b2_ref,
                      w3_ref, g3_ref, b3_ref, out_ref):
    B, H, W, CIN = x_ref.shape           # CIN == COUT (downsample=None)
    P = w1_ref.shape[1]                  # padded bottleneck width
    COUT = w3_ref.shape[1]
    HW = H * W

    x = x_ref[...]                       # (B, H, W, CIN) f32 residual

    # ---- conv1: 1x1 conv == channel matmul (bf16 operands, f32 accumulate) ----
    h = jnp.dot(x.reshape(B * HW, CIN).astype(jnp.bfloat16), w1_ref[...],
                preferred_element_type=jnp.float32)            # (B*HW, P)
    h = _instance_norm(h.reshape(B, HW, P), g1_ref[...], b1_ref[...])
    h = jnp.maximum(h, 0.0)

    # ---- conv2: 3x3 conv (pad=1) as ONE im2col matmul with K = 9*P ------------
    # NOTE: (B,HW,P)->(B,H,W,P) is layout-free because W is a multiple of 8 and P
    # a multiple of 128 (enforced by the wrapper padding / demo shapes).
    h4 = h.reshape(B, H, W, P)
    col = lax.broadcasted_iota(jnp.int32, (W, 1), 0)           # (W, 1)
    # W-shifts: sublane rotation on the XLU + edge mask (zero padding); the masks
    # run in f32, then each tap is narrowed to bf16 so the 9*P im2col buffer is
    # half-size and already an MXU-ready operand.
    left = jnp.where(col > 0, pltpu.roll(h4, shift=1, axis=2), 0.0)           # in[., x-1]
    right = jnp.where(col < W - 1, pltpu.roll(h4, shift=W - 1, axis=2), 0.0)  # in[., x+1]
    taps_x = tuple(t.astype(jnp.bfloat16) for t in (left, h4, right))         # kx = 0,1,2

    zero_row = jnp.zeros((B, 1, W, P), jnp.bfloat16)
    cols = []
    for ky in range(3):                  # static unroll; order matches w2 layout
        for kx in range(3):
            v = taps_x[kx]
            if ky == 0:                  # needs in[y-1, .]
                v = jnp.concatenate([zero_row, v[:, :H - 1]], axis=1)
            elif ky == 2:                # needs in[y+1, .]
                v = jnp.concatenate([v[:, 1:], zero_row], axis=1)
            cols.append(v)
    im2col = jnp.concatenate(cols, axis=-1).reshape(B * HW, 9 * P)   # bf16
    h2 = jnp.dot(im2col, w2_ref[...],
                 preferred_element_type=jnp.float32)           # (B*HW, P)
    h2 = _instance_norm(h2.reshape(B, HW, P), g2_ref[...], b2_ref[...])
    h2 = jnp.maximum(h2, 0.0)

    # ---- conv3: 1x1 conv -> planes * 4 ----------------------------------------
    h3 = jnp.dot(h2.reshape(B * HW, P).astype(jnp.bfloat16), w3_ref[...],
                 preferred_element_type=jnp.float32)           # (B*HW, COUT)
    h3 = _instance_norm(h3.reshape(B, HW, COUT), g3_ref[...], b3_ref[...])

    # ---- residual add + relu (f32), lane-dense store --------------------------
    out = jnp.maximum(h3.reshape(B, H, W, COUT) + x, 0.0)
    out_ref[...] = out.astype(out_ref.dtype)


def _round_up(n, m):
    return ((n + m - 1) // m) * m


def bottleneck_pallas(x_nchw, w1_oihw, g1, b1, w2_oihw, g2, b2, w3_oihw, g3, b3,
                      b_blk=None):
    N, CIN, H, W = x_nchw.shape
    P = w1_oihw.shape[0]
    COUT = w3_oihw.shape[0]
    assert COUT == CIN, "stride=1 / downsample=None requires inplanes == planes*4"

    CP = _round_up(CIN, LANE)            # padded input / residual / output width
    PP = _round_up(P, LANE)              # padded bottleneck width

    if b_blk is None:
        # Largest divisor of N with <= 8 samples per grid step while keeping the
        # grid extent >= 2 (so both v7x TensorCores get work).
        # TODO(synk): re-derive the cap from the per-generation VMEM budget
        #             (v7x has 64 MiB physical) for real ResNet shapes.
        cands = [d for d in range(1, N + 1)
                 if N % d == 0 and d <= 8 and (N // d >= 2 or N == 1)]
        b_blk = max(cands) if cands else 1
    assert N % b_blk == 0

    def pad_last(a, target):
        extra = target - a.shape[-1]
        return a if extra == 0 else jnp.pad(a, [(0, 0)] * (a.ndim - 1) + [(0, extra)])

    # NCHW -> NHWC (channels on lanes), zero-padded to a lane multiple.
    x_p = pad_last(jnp.transpose(x_nchw, (0, 2, 3, 1)), CP).astype(jnp.float32)

    # Weights as (Cin, Cout) matrices, channel-padded, bf16 MXU operands.
    w1_m = jnp.zeros((CP, PP), jnp.float32).at[:CIN, :P].set(w1_oihw[:, :, 0, 0].T)
    w3_m = jnp.zeros((PP, CP), jnp.float32).at[:P, :COUT].set(w3_oihw[:, :, 0, 0].T)
    w2_t = jnp.transpose(w2_oihw, (2, 3, 1, 0))                      # (3,3,Cin,Cout)
    w2_m = jnp.zeros((3, 3, PP, PP), jnp.float32).at[:, :, :P, :P].set(w2_t)
    w2_m = w2_m.reshape(9 * PP, PP)                                  # tap-major im2col layout
    w1_m, w2_m, w3_m = (w.astype(jnp.bfloat16) for w in (w1_m, w2_m, w3_m))

    g1p, b1p = pad_last(g1.reshape(1, -1), PP), pad_last(b1.reshape(1, -1), PP)
    g2p, b2p = pad_last(g2.reshape(1, -1), PP), pad_last(b2.reshape(1, -1), PP)
    g3p, b3p = pad_last(g3.reshape(1, -1), CP), pad_last(b3.reshape(1, -1), CP)

    grid_spec = pltpu.PrefetchScalarGridSpec(
        num_scalar_prefetch=0,
        grid=(N // b_blk,),
        in_specs=[
            pl.BlockSpec((b_blk, H, W, CP), lambda n: (n, 0, 0, 0)),
            pl.BlockSpec((CP, PP), lambda n: (0, 0)),
            pl.BlockSpec((1, PP), lambda n: (0, 0)),
            pl.BlockSpec((1, PP), lambda n: (0, 0)),
            pl.BlockSpec((9 * PP, PP), lambda n: (0, 0)),
            pl.BlockSpec((1, PP), lambda n: (0, 0)),
            pl.BlockSpec((1, PP), lambda n: (0, 0)),
            pl.BlockSpec((PP, CP), lambda n: (0, 0)),
            pl.BlockSpec((1, CP), lambda n: (0, 0)),
            pl.BlockSpec((1, CP), lambda n: (0, 0)),
        ],
        out_specs=pl.BlockSpec((b_blk, H, W, CP), lambda n: (n, 0, 0, 0)),
    )
    out_p = pl.pallas_call(
        bottleneck_kernel,
        out_shape=jax.ShapeDtypeStruct((N, H, W, CP), jnp.float32),
        grid_spec=grid_spec,
        compiler_params=pltpu.CompilerParams(
            dimension_semantics=("parallel",),
            # Safe on v5e/v6e/v7x for these block sizes; for real ResNet shapes on
            # v7x (64 MiB VMEM) tile the spatial dim into row strips with a 1-row
            # halo and re-derive this limit.
            vmem_limit_bytes=32 * 1024 * 1024,
        ),
    )(x_p, w1_m, g1p, b1p, w2_m, g2p, b2p, w3_m, g3p, b3p)

    # Drop channel padding, back to NCHW.
    return jnp.transpose(out_p[..., :COUT], (0, 3, 1, 2))


# ---------------------------- pure-JAX reference ----------------------------
def _conv_nchw(x, w, pad, conv_dtype):
    return lax.conv_general_dilated(
        x.astype(conv_dtype), w.astype(conv_dtype),
        window_strides=(1, 1), padding=pad,
        dimension_numbers=("NCHW", "OIHW", "NCHW"),
        preferred_element_type=jnp.float32)


def _inorm_nchw(x, gamma, beta):
    mu = jnp.mean(x, axis=(2, 3), keepdims=True)
    var = jnp.mean((x - mu) ** 2, axis=(2, 3), keepdims=True)
    y = (x - mu) * lax.rsqrt(var + EPS)
    return y * gamma[None, :, None, None] + beta[None, :, None, None]


def bottleneck_reference(x, w1, g1, b1, w2, g2, b2, w3, g3, b3,
                         conv_dtype=jnp.float32):
    out = _conv_nchw(x, w1, [(0, 0), (0, 0)], conv_dtype)
    out = jnp.maximum(_inorm_nchw(out, g1, b1), 0.0)
    out = _conv_nchw(out, w2, [(1, 1), (1, 1)], conv_dtype)
    out = jnp.maximum(_inorm_nchw(out, g2, b2), 0.0)
    out = _conv_nchw(out, w3, [(0, 0), (0, 0)], conv_dtype)
    out = _inorm_nchw(out, g3, b3)
    return jnp.maximum(out + x, 0.0)


if __name__ == "__main__":
    # Small shapes: planes=8, inplanes=planes*4=32 (downsample=None), 8x8 spatial.
    N, planes, H, W = 4, 8, 8, 8
    inplanes = planes * 4                # Bottleneck.expansion = 4
    cout = planes * 4

    key = jax.random.PRNGKey(0)
    ks = jax.random.split(key, 10)
    x = jax.random.normal(ks[0], (N, inplanes, H, W), jnp.float32)

    # Conv weights in PyTorch OIHW form; instance-norm (GroupNorm) affine params.
    w1 = 0.1 * jax.random.normal(ks[1], (planes, inplanes, 1, 1), jnp.float32)
    w2 = 0.1 * jax.random.normal(ks[2], (planes, planes, 3, 3), jnp.float32)
    w3 = 0.1 * jax.random.normal(ks[3], (cout, planes, 1, 1), jnp.float32)
    g1 = 1.0 + 0.1 * jax.random.normal(ks[4], (planes,), jnp.float32)
    b1 = 0.1 * jax.random.normal(ks[5], (planes,), jnp.float32)
    g2 = 1.0 + 0.1 * jax.random.normal(ks[6], (planes,), jnp.float32)
    b2 = 0.1 * jax.random.normal(ks[7], (planes,), jnp.float32)
    g3 = 1.0 + 0.1 * jax.random.normal(ks[8], (cout,), jnp.float32)
    b3 = 0.1 * jax.random.normal(ks[9], (cout,), jnp.float32)

    out = bottleneck_pallas(x, w1, g1, b1, w2, g2, b2, w3, g3, b3)
    jax.block_until_ready(out)

    ref_bf16 = bottleneck_reference(x, w1, g1, b1, w2, g2, b2, w3, g3, b3,
                                    conv_dtype=jnp.bfloat16)
    ref_f32 = bottleneck_reference(x, w1, g1, b1, w2, g2, b2, w3, g3, b3,
                                   conv_dtype=jnp.float32)
    assert out.shape == ref_f32.shape == (N, cout, H, W)
    # Tight check against a reference with matching bf16-operand conv numerics.
    assert jnp.allclose(out, ref_bf16, atol=2e-2, rtol=2e-2), \
        float(jnp.max(jnp.abs(out - ref_bf16)))
    # Loose sanity check against exact-f32 module semantics (bf16 MXU operands give
    # ~1e-2-level deviations that the instance norms amplify).
    assert jnp.allclose(out, ref_f32, atol=2e-1, rtol=2e-1), \
        float(jnp.max(jnp.abs(out - ref_f32)))
    print("KERNEL_OK")
</pallas_src>

<mosaic_0001>
module attributes {stable_mosaic.version = 11 : i64} {
  func.func @bottleneck_kernel(%arg0: i32, %arg1: memref<2x8x8x128xf32, #tpu.memory_space<vmem>>, %arg2: memref<128x128xbf16, #tpu.memory_space<vmem>>, %arg3: memref<1x128xf32, #tpu.memory_space<vmem>>, %arg4: memref<1x128xf32, #tpu.memory_space<vmem>>, %arg5: memref<1152x128xbf16, #tpu.memory_space<vmem>>, %arg6: memref<1x128xf32, #tpu.memory_space<vmem>>, %arg7: memref<1x128xf32, #tpu.memory_space<vmem>>, %arg8: memref<128x128xbf16, #tpu.memory_space<vmem>>, %arg9: memref<1x128xf32, #tpu.memory_space<vmem>>, %arg10: memref<1x128xf32, #tpu.memory_space<vmem>>, %arg11: memref<2x8x8x128xf32, #tpu.memory_space<vmem>>) attributes {dimension_semantics = [#tpu.dimension_semantics<parallel>], iteration_bounds = array<i64: 2>, scalar_prefetch = 0 : i64, scratch_operands = 0 : i64, tpu.core_type = #tpu.core_type<tc>, window_params = [{transform_indices = @transform_0, window_bounds = array<i64: 2, 8, 8, 128>}, {pipeline_mode = #tpu.pipeline_mode<synchronous>, transform_indices = @transform_1, window_bounds = array<i64: 128, 128>}, {pipeline_mode = #tpu.pipeline_mode<synchronous>, transform_indices = @transform_2, window_bounds = array<i64: 1, 128>}, {pipeline_mode = #tpu.pipeline_mode<synchronous>, transform_indices = @transform_3, window_bounds = array<i64: 1, 128>}, {pipeline_mode = #tpu.pipeline_mode<synchronous>, transform_indices = @transform_4, window_bounds = array<i64: 1152, 128>}, {pipeline_mode = #tpu.pipeline_mode<synchronous>, transform_indices = @transform_5, window_bounds = array<i64: 1, 128>}, {pipeline_mode = #tpu.pipeline_mode<synchronous>, transform_indices = @transform_6, window_bounds = array<i64: 1, 128>}, {pipeline_mode = #tpu.pipeline_mode<synchronous>, transform_indices = @transform_7, window_bounds = array<i64: 128, 128>}, {pipeline_mode = #tpu.pipeline_mode<synchronous>, transform_indices = @transform_8, window_bounds = array<i64: 1, 128>}, {pipeline_mode = #tpu.pipeline_mode<synchronous>, transform_indices = @transform_9, window_bounds = array<i64: 1, 128>}, {transform_indices = @transform_10, window_bounds = array<i64: 2, 8, 8, 128>}]} {
    %c0 = arith.constant 0 : index
    %c0_0 = arith.constant 0 : index
    %c0_1 = arith.constant 0 : index
    %c0_2 = arith.constant 0 : index
    %0 = vector.load %arg1[%c0, %c0_0, %c0_1, %c0_2] : memref<2x8x8x128xf32, #tpu.memory_space<vmem>>, vector<2x8x8x128xf32>
    %1 = vector.shape_cast %0 : vector<2x8x8x128xf32> to vector<128x128xf32>
    %2 = arith.truncf %1 : vector<128x128xf32> to vector<128x128xbf16>
    %c0_3 = arith.constant 0 : index
    %c0_4 = arith.constant 0 : index
    %3 = vector.load %arg2[%c0_3, %c0_4] : memref<128x128xbf16, #tpu.memory_space<vmem>>, vector<128x128xbf16>
    %cst = arith.constant dense<0.000000e+00> : vector<128x128xf32>
    %4 = tpu.matmul %2, %3, %cst {dimension_numbers = #tpu.dot_dimension_numbers<[1], [0], [0], [1], [0, 0, 1, 1], [], []>} : vector<128x128xbf16>, vector<128x128xbf16>, vector<128x128xf32> -> vector<128x128xf32>
    %5 = vector.shape_cast %4 : vector<128x128xf32> to vector<2x64x128xf32>
    %c0_5 = arith.constant 0 : index
    %c0_6 = arith.constant 0 : index
    %6 = vector.load %arg3[%c0_5, %c0_6] : memref<1x128xf32, #tpu.memory_space<vmem>>, vector<1x128xf32>
    %c0_7 = arith.constant 0 : index
    %c0_8 = arith.constant 0 : index
    %7 = vector.load %arg4[%c0_7, %c0_8] : memref<1x128xf32, #tpu.memory_space<vmem>>, vector<1x128xf32>
    %cst_9 = arith.constant dense<0.000000e+00> : vector<2x128xf32>
    %8 = vector.multi_reduction <add>, %5, %cst_9 [1] : vector<2x64x128xf32> to vector<2x128xf32>
    %9 = vector.shape_cast %8 : vector<2x128xf32> to vector<2x1x128xf32>
    %cst_10 = arith.constant 6.400000e+01 : f32
    %10 = vector.broadcast %cst_10 : f32 to vector<2x1x128xf32>
    %11 = arith.divf %9, %10 : vector<2x1x128xf32>
    %12 = arith.mulf %5, %5 : vector<2x64x128xf32>
    %cst_11 = arith.constant dense<0.000000e+00> : vector<2x128xf32>
    %13 = vector.multi_reduction <add>, %12, %cst_11 [1] : vector<2x64x128xf32> to vector<2x128xf32>
    %14 = vector.shape_cast %13 : vector<2x128xf32> to vector<2x1x128xf32>
    %cst_12 = arith.constant 6.400000e+01 : f32
    %15 = vector.broadcast %cst_12 : f32 to vector<2x1x128xf32>
    %16 = arith.divf %14, %15 : vector<2x1x128xf32>
    %17 = arith.mulf %11, %11 : vector<2x1x128xf32>
    %18 = arith.subf %16, %17 : vector<2x1x128xf32>
    %cst_13 = arith.constant 0.000000e+00 : f32
    %19 = vector.broadcast %cst_13 : f32 to vector<2x1x128xf32>
    %20 = arith.maximumf %18, %19 : vector<2x1x128xf32>
    %21 = vector.broadcast %11 : vector<2x1x128xf32> to vector<2x64x128xf32>
    %22 = arith.subf %5, %21 : vector<2x64x128xf32>
    %cst_14 = arith.constant 9.99999974E-6 : f32
    %23 = vector.broadcast %cst_14 : f32 to vector<2x1x128xf32>
    %24 = arith.addf %20, %23 : vector<2x1x128xf32>
    %25 = math.rsqrt %24 : vector<2x1x128xf32>
    %26 = vector.broadcast %25 : vector<2x1x128xf32> to vector<2x64x128xf32>
    %27 = arith.mulf %22, %26 : vector<2x64x128xf32>
    %28 = vector.shape_cast %6 : vector<1x128xf32> to vector<1x1x128xf32>
    %29 = vector.broadcast %28 : vector<1x1x128xf32> to vector<2x64x128xf32>
    %30 = arith.mulf %27, %29 : vector<2x64x128xf32>
    %31 = vector.shape_cast %7 : vector<1x128xf32> to vector<1x1x128xf32>
    %32 = vector.broadcast %31 : vector<1x1x128xf32> to vector<2x64x128xf32>
    %33 = arith.addf %30, %32 : vector<2x64x128xf32>
    %cst_15 = arith.constant 0.000000e+00 : f32
    %34 = vector.broadcast %cst_15 : f32 to vector<2x64x128xf32>
    %35 = arith.maximumf %33, %34 : vector<2x64x128xf32>
    %36 = vector.shape_cast %35 : vector<2x64x128xf32> to vector<2x8x8x128xf32>
    %37 = tpu.iota {dimensions = array<i32: 0>} : vector<8x1xi32>
    %c0_i32 = arith.constant 0 : i32
    %38 = vector.broadcast %c0_i32 : i32 to vector<8x1xi32>
    %39 = arith.cmpi sgt, %37, %38 : vector<8x1xi32>
    %c1_i32 = arith.constant 1 : i32
    %40 = tpu.dynamic_rotate %36 by %c1_i32 dim 2 : vector<2x8x8x128xf32>, i32 -> vector<2x8x8x128xf32>
    %cst_16 = arith.constant 0.000000e+00 : f32
    %41 = vector.shape_cast %39 : vector<8x1xi1> to vector<1x1x8x1xi1>
    %42 = vector.broadcast %41 : vector<1x1x8x1xi1> to vector<2x8x8x128xi1>
    %43 = vector.broadcast %cst_16 : f32 to vector<2x8x8x128xf32>
    %44 = arith.select %42, %40, %43 : vector<2x8x8x128xi1>, vector<2x8x8x128xf32>
    %c7_i32 = arith.constant 7 : i32
    %45 = vector.broadcast %c7_i32 : i32 to vector<8x1xi32>
    %46 = arith.cmpi slt, %37, %45 : vector<8x1xi32>
    %c7_i32_17 = arith.constant 7 : i32
    %47 = tpu.dynamic_rotate %36 by %c7_i32_17 dim 2 : vector<2x8x8x128xf32>, i32 -> vector<2x8x8x128xf32>
    %cst_18 = arith.constant 0.000000e+00 : f32
    %48 = vector.shape_cast %46 : vector<8x1xi1> to vector<1x1x8x1xi1>
    %49 = vector.broadcast %48 : vector<1x1x8x1xi1> to vector<2x8x8x128xi1>
    %50 = vector.broadcast %cst_18 : f32 to vector<2x8x8x128xf32>
    %51 = arith.select %49, %47, %50 : vector<2x8x8x128xi1>, vector<2x8x8x128xf32>
    %52 = arith.truncf %44 : vector<2x8x8x128xf32> to vector<2x8x8x128xbf16>
    %53 = arith.truncf %36 : vector<2x8x8x128xf32> to vector<2x8x8x128xbf16>
    %54 = arith.truncf %51 : vector<2x8x8x128xf32> to vector<2x8x8x128xbf16>
    %cst_19 = arith.constant 0.000000e+00 : bf16
    %55 = vector.broadcast %cst_19 : bf16 to vector<2x1x8x128xbf16>
    %56 = vector.extract_strided_slice %52 {offsets = [0, 0, 0, 0], sizes = [2, 7, 8, 128], strides = [1, 1, 1, 1]} : vector<2x8x8x128xbf16> to vector<2x7x8x128xbf16>
    %57 = tpu.concatenate %55, %56 in 1 : vector<2x1x8x128xbf16>, vector<2x7x8x128xbf16> -> vector<2x8x8x128xbf16>
    %58 = vector.extract_strided_slice %53 {offsets = [0, 0, 0, 0], sizes = [2, 7, 8, 128], strides = [1, 1, 1, 1]} : vector<2x8x8x128xbf16> to vector<2x7x8x128xbf16>
    %59 = tpu.concatenate %55, %58 in 1 : vector<2x1x8x128xbf16>, vector<2x7x8x128xbf16> -> vector<2x8x8x128xbf16>
    %60 = vector.extract_strided_slice %54 {offsets = [0, 0, 0, 0], sizes = [2, 7, 8, 128], strides = [1, 1, 1, 1]} : vector<2x8x8x128xbf16> to vector<2x7x8x128xbf16>
    %61 = tpu.concatenate %55, %60 in 1 : vector<2x1x8x128xbf16>, vector<2x7x8x128xbf16> -> vector<2x8x8x128xbf16>
    %62 = vector.extract_strided_slice %52 {offsets = [0, 1, 0, 0], sizes = [2, 7, 8, 128], strides = [1, 1, 1, 1]} : vector<2x8x8x128xbf16> to vector<2x7x8x128xbf16>
    %63 = tpu.concatenate %62, %55 in 1 : vector<2x7x8x128xbf16>, vector<2x1x8x128xbf16> -> vector<2x8x8x128xbf16>
    %64 = vector.extract_strided_slice %53 {offsets = [0, 1, 0, 0], sizes = [2, 7, 8, 128], strides = [1, 1, 1, 1]} : vector<2x8x8x128xbf16> to vector<2x7x8x128xbf16>
    %65 = tpu.concatenate %64, %55 in 1 : vector<2x7x8x128xbf16>, vector<2x1x8x128xbf16> -> vector<2x8x8x128xbf16>
    %66 = vector.extract_strided_slice %54 {offsets = [0, 1, 0, 0], sizes = [2, 7, 8, 128], strides = [1, 1, 1, 1]} : vector<2x8x8x128xbf16> to vector<2x7x8x128xbf16>
    %67 = tpu.concatenate %66, %55 in 1 : vector<2x7x8x128xbf16>, vector<2x1x8x128xbf16> -> vector<2x8x8x128xbf16>
    %68 = tpu.concatenate %57, %59, %61, %52, %53, %54, %63, %65, %67 in 3 : vector<2x8x8x128xbf16>, vector<2x8x8x128xbf16>, vector<2x8x8x128xbf16>, vector<2x8x8x128xbf16>, vector<2x8x8x128xbf16>, vector<2x8x8x128xbf16>, vector<2x8x8x128xbf16>, vector<2x8x8x128xbf16>, vector<2x8x8x128xbf16> -> vector<2x8x8x1152xbf16>
    %69 = vector.shape_cast %68 : vector<2x8x8x1152xbf16> to vector<128x1152xbf16>
    %c0_20 = arith.constant 0 : index
    %c0_21 = arith.constant 0 : index
    %70 = vector.load %arg5[%c0_20, %c0_21] : memref<1152x128xbf16, #tpu.memory_space<vmem>>, vector<1152x128xbf16>
    %cst_22 = arith.constant dense<0.000000e+00> : vector<128x128xf32>
    %71 = tpu.matmul %69, %70, %cst_22 {dimension_numbers = #tpu.dot_dimension_numbers<[1], [0], [0], [1], [0, 0, 1, 1], [], []>} : vector<128x1152xbf16>, vector<1152x128xbf16>, vector<128x128xf32> -> vector<128x128xf32>
    %72 = vector.shape_cast %71 : vector<128x128xf32> to vector<2x64x128xf32>
    %c0_23 = arith.constant 0 : index
    %c0_24 = arith.constant 0 : index
    %73 = vector.load %arg6[%c0_23, %c0_24] : memref<1x128xf32, #tpu.memory_space<vmem>>, vector<1x128xf32>
    %c0_25 = arith.constant 0 : index
    %c0_26 = arith.constant 0 : index
    %74 = vector.load %arg7[%c0_25, %c0_26] : memref<1x128xf32, #tpu.memory_space<vmem>>, vector<1x128xf32>
    %cst_27 = arith.constant dense<0.000000e+00> : vector<2x128xf32>
    %75 = vector.multi_reduction <add>, %72, %cst_27 [1] : vector<2x64x128xf32> to vector<2x128xf32>
    %76 = vector.shape_cast %75 : vector<2x128xf32> to vector<2x1x128xf32>
    %cst_28 = arith.constant 6.400000e+01 : f32
    %77 = vector.broadcast %cst_28 : f32 to vector<2x1x128xf32>
    %78 = arith.divf %76, %77 : vector<2x1x128xf32>
    %79 = arith.mulf %72, %72 : vector<2x64x128xf32>
    %cst_29 = arith.constant dense<0.000000e+00> : vector<2x128xf32>
    %80 = vector.multi_reduction <add>, %79, %cst_29 [1] : vector<2x64x128xf32> to vector<2x128xf32>
    %81 = vector.shape_cast %80 : vector<2x128xf32> to vector<2x1x128xf32>
    %cst_30 = arith.constant 6.400000e+01 : f32
    %82 = vector.broadcast %cst_30 : f32 to vector<2x1x128xf32>
    %83 = arith.divf %81, %82 : vector<2x1x128xf32>
    %84 = arith.mulf %78, %78 : vector<2x1x128xf32>
    %85 = arith.subf %83, %84 : vector<2x1x128xf32>
    %cst_31 = arith.constant 0.000000e+00 : f32
    %86 = vector.broadcast %cst_31 : f32 to vector<2x1x128xf32>
    %87 = arith.maximumf %85, %86 : vector<2x1x128xf32>
    %88 = vector.broadcast %78 : vector<2x1x128xf32> to vector<2x64x128xf32>
    %89 = arith.subf %72, %88 : vector<2x64x128xf32>
    %cst_32 = arith.constant 9.99999974E-6 : f32
    %90 = vector.broadcast %cst_32 : f32 to vector<2x1x128xf32>
    %91 = arith.addf %87, %90 : vector<2x1x128xf32>
    %92 = math.rsqrt %91 : vector<2x1x128xf32>
    %93 = vector.broadcast %92 : vector<2x1x128xf32> to vector<2x64x128xf32>
    %94 = arith.mulf %89, %93 : vector<2x64x128xf32>
    %95 = vector.shape_cast %73 : vector<1x128xf32> to vector<1x1x128xf32>
    %96 = vector.broadcast %95 : vector<1x1x128xf32> to vector<2x64x128xf32>
    %97 = arith.mulf %94, %96 : vector<2x64x128xf32>
    %98 = vector.shape_cast %74 : vector<1x128xf32> to vector<1x1x128xf32>
    %99 = vector.broadcast %98 : vector<1x1x128xf32> to vector<2x64x128xf32>
    %100 = arith.addf %97, %99 : vector<2x64x128xf32>
    %cst_33 = arith.constant 0.000000e+00 : f32
    %101 = vector.broadcast %cst_33 : f32 to vector<2x64x128xf32>
    %102 = arith.maximumf %100, %101 : vector<2x64x128xf32>
    %103 = vector.shape_cast %102 : vector<2x64x128xf32> to vector<128x128xf32>
    %104 = arith.truncf %103 : vector<128x128xf32> to vector<128x128xbf16>
    %c0_34 = arith.constant 0 : index
    %c0_35 = arith.constant 0 : index
    %105 = vector.load %arg8[%c0_34, %c0_35] : memref<128x128xbf16, #tpu.memory_space<vmem>>, vector<128x128xbf16>
    %cst_36 = arith.constant dense<0.000000e+00> : vector<128x128xf32>
    %106 = tpu.matmul %104, %105, %cst_36 {dimension_numbers = #tpu.dot_dimension_numbers<[1], [0], [0], [1], [0, 0, 1, 1], [], []>} : vector<128x128xbf16>, vector<128x128xbf16>, vector<128x128xf32> -> vector<128x128xf32>
    %107 = vector.shape_cast %106 : vector<128x128xf32> to vector<2x64x128xf32>
    %c0_37 = arith.constant 0 : index
    %c0_38 = arith.constant 0 : index
    %108 = vector.load %arg9[%c0_37, %c0_38] : memref<1x128xf32, #tpu.memory_space<vmem>>, vector<1x128xf32>
    %c0_39 = arith.constant 0 : index
    %c0_40 = arith.constant 0 : index
    %109 = vector.load %arg10[%c0_39, %c0_40] : memref<1x128xf32, #tpu.memory_space<vmem>>, vector<1x128xf32>
    %cst_41 = arith.constant dense<0.000000e+00> : vector<2x128xf32>
    %110 = vector.multi_reduction <add>, %107, %cst_41 [1] : vector<2x64x128xf32> to vector<2x128xf32>
    %111 = vector.shape_cast %110 : vector<2x128xf32> to vector<2x1x128xf32>
    %cst_42 = arith.constant 6.400000e+01 : f32
    %112 = vector.broadcast %cst_42 : f32 to vector<2x1x128xf32>
    %113 = arith.divf %111, %112 : vector<2x1x128xf32>
    %114 = arith.mulf %107, %107 : vector<2x64x128xf32>
    %cst_43 = arith.constant dense<0.000000e+00> : vector<2x128xf32>
    %115 = vector.multi_reduction <add>, %114, %cst_43 [1] : vector<2x64x128xf32> to vector<2x128xf32>
    %116 = vector.shape_cast %115 : vector<2x128xf32> to vector<2x1x128xf32>
    %cst_44 = arith.constant 6.400000e+01 : f32
    %117 = vector.broadcast %cst_44 : f32 to vector<2x1x128xf32>
    %118 = arith.divf %116, %117 : vector<2x1x128xf32>
    %119 = arith.mulf %113, %113 : vector<2x1x128xf32>
    %120 = arith.subf %118, %119 : vector<2x1x128xf32>
    %cst_45 = arith.constant 0.000000e+00 : f32
    %121 = vector.broadcast %cst_45 : f32 to vector<2x1x128xf32>
    %122 = arith.maximumf %120, %121 : vector<2x1x128xf32>
    %123 = vector.broadcast %113 : vector<2x1x128xf32> to vector<2x64x128xf32>
    %124 = arith.subf %107, %123 : vector<2x64x128xf32>
    %cst_46 = arith.constant 9.99999974E-6 : f32
    %125 = vector.broadcast %cst_46 : f32 to vector<2x1x128xf32>
    %126 = arith.addf %122, %125 : vector<2x1x128xf32>
    %127 = math.rsqrt %126 : vector<2x1x128xf32>
    %128 = vector.broadcast %127 : vector<2x1x128xf32> to vector<2x64x128xf32>
    %129 = arith.mulf %124, %128 : vector<2x64x128xf32>
    %130 = vector.shape_cast %108 : vector<1x128xf32> to vector<1x1x128xf32>
    %131 = vector.broadcast %130 : vector<1x1x128xf32> to vector<2x64x128xf32>
    %132 = arith.mulf %129, %131 : vector<2x64x128xf32>
    %133 = vector.shape_cast %109 : vector<1x128xf32> to vector<1x1x128xf32>
    %134 = vector.broadcast %133 : vector<1x1x128xf32> to vector<2x64x128xf32>
    %135 = arith.addf %132, %134 : vector<2x64x128xf32>
    %136 = vector.shape_cast %135 : vector<2x64x128xf32> to vector<2x8x8x128xf32>
    %137 = arith.addf %136, %0 : vector<2x8x8x128xf32>
    %cst_47 = arith.constant 0.000000e+00 : f32
    %138 = vector.broadcast %cst_47 : f32 to vector<2x8x8x128xf32>
    %139 = arith.maximumf %137, %138 : vector<2x8x8x128xf32>
    %c0_48 = arith.constant 0 : index
    %c0_49 = arith.constant 0 : index
    %c0_50 = arith.constant 0 : index
    %c0_51 = arith.constant 0 : index
    %140 = vector.load %arg11[%c0_48, %c0_49, %c0_50, %c0_51] : memref<2x8x8x128xf32, #tpu.memory_space<vmem>>, vector<2x8x8x128xf32>
    tpu.vector_store %arg11[%c0_48, %c0_49, %c0_50, %c0_51], %139 {strides = array<i32>} : memref<2x8x8x128xf32, #tpu.memory_space<vmem>>, vector<2x8x8x128xf32>,
    return
  }
  func.func @transform_0(%arg0: i32) -> (i32, i32, i32, i32) {
    %c0_i32 = arith.constant 0 : i32
    %c0_i32_0 = arith.constant 0 : i32
    %c0_i32_1 = arith.constant 0 : i32
    %c0_i32_2 = arith.constant 0 : i32
    return %arg0, %c0_i32, %c0_i32_0, %c0_i32_1 : i32, i32, i32, i32
  }
  func.func @transform_1(%arg0: i32) -> (i32, i32) {
    %c0_i32 = arith.constant 0 : i32
    %c0_i32_0 = arith.constant 0 : i32
    %c0_i32_1 = arith.constant 0 : i32
    return %c0_i32, %c0_i32_0 : i32, i32
  }
  func.func @transform_2(%arg0: i32) -> (i32, i32) {
    %c0_i32 = arith.constant 0 : i32
    %c0_i32_0 = arith.constant 0 : i32
    %c0_i32_1 = arith.constant 0 : i32
    return %c0_i32, %c0_i32_0 : i32, i32
  }
  func.func @transform_3(%arg0: i32) -> (i32, i32) {
    %c0_i32 = arith.constant 0 : i32
    %c0_i32_0 = arith.constant 0 : i32
    %c0_i32_1 = arith.constant 0 : i32
    return %c0_i32, %c0_i32_0 : i32, i32
  }
  func.func @transform_4(%arg0: i32) -> (i32, i32) {
    %c0_i32 = arith.constant 0 : i32
    %c0_i32_0 = arith.constant 0 : i32
    %c0_i32_1 = arith.constant 0 : i32
    return %c0_i32, %c0_i32_0 : i32, i32
  }
  func.func @transform_5(%arg0: i32) -> (i32, i32) {
    %c0_i32 = arith.constant 0 : i32
    %c0_i32_0 = arith.constant 0 : i32
    %c0_i32_1 = arith.constant 0 : i32
    return %c0_i32, %c0_i32_0 : i32, i32
  }
  func.func @transform_6(%arg0: i32) -> (i32, i32) {
    %c0_i32 = arith.constant 0 : i32
    %c0_i32_0 = arith.constant 0 : i32
    %c0_i32_1 = arith.constant 0 : i32
    return %c0_i32, %c0_i32_0 : i32, i32
  }
  func.func @transform_7(%arg0: i32) -> (i32, i32) {
    %c0_i32 = arith.constant 0 : i32
    %c0_i32_0 = arith.constant 0 : i32
    %c0_i32_1 = arith.constant 0 : i32
    return %c0_i32, %c0_i32_0 : i32, i32
  }
  func.func @transform_8(%arg0: i32) -> (i32, i32) {
    %c0_i32 = arith.constant 0 : i32
    %c0_i32_0 = arith.constant 0 : i32
    %c0_i32_1 = arith.constant 0 : i32
    return %c0_i32, %c0_i32_0 : i32, i32
  }
  func.func @transform_9(%arg0: i32) -> (i32, i32) {
    %c0_i32 = arith.constant 0 : i32
    %c0_i32_0 = arith.constant 0 : i32
    %c0_i32_1 = arith.constant 0 : i32
    return %c0_i32, %c0_i32_0 : i32, i32
  }
  func.func @transform_10(%arg0: i32) -> (i32, i32, i32, i32) {
    %c0_i32 = arith.constant 0 : i32
    %c0_i32_0 = arith.constant 0 : i32
    %c0_i32_1 = arith.constant 0 : i32
    %c0_i32_2 = arith.constant 0 : i32
    return %arg0, %c0_i32, %c0_i32_0, %c0_i32_1 : i32, i32, i32, i32
  }
}

</mosaic_0001>

<llo_original>
// kernel: tpu_custom_call.1
$region0: #{tpu_custom_call.1}
  #allocation0 [shape = 'u32[]', space=smem, size = 0x4, offset = 0x4, fixed_abs, tag = 'smem constant byte address 0x4 - core index']
  #allocation1 [shape = 'u32[144,128]{1,0:T(1,128)}', space=vmem, size = 0x12000, scoped, tag = 'internal scratch']
  %s0 = inlined_call_operand.hbm [shape: f32[4,8,8,128], index: 0, kind: input, shape index: {}]
  %s1 = inlined_call_operand.hbm [shape: bf16[128,128], index: 1, kind: input, shape index: {}]
  %s2 = inlined_call_operand.vmem [shape: f32[1,128], index: 2, kind: input, shape index: {}]
  %s3 = inlined_call_operand.vmem [shape: f32[1,128], index: 3, kind: input, shape index: {}]
  %s4 = inlined_call_operand.hbm [shape: bf16[1152,128], index: 4, kind: input, shape index: {}]
  %s5 = inlined_call_operand.vmem [shape: f32[1,128], index: 5, kind: input, shape index: {}]
  %s6 = inlined_call_operand.vmem [shape: f32[1,128], index: 6, kind: input, shape index: {}]
  %s7 = inlined_call_operand.hbm [shape: bf16[128,128], index: 7, kind: input, shape index: {}]
  %s8 = inlined_call_operand.vmem [shape: f32[1,128], index: 8, kind: input, shape index: {}]
  %s9 = inlined_call_operand.vmem [shape: f32[1,128], index: 9, kind: input, shape index: {}]
  %s10 = inlined_call_operand.hbm [shape: f32[4,8,8,128], index: 10, kind: output, shape index: {}]
  %s11 = sld [smem:[#allocation0]]
  $region89: #{tpu_custom_call.1} parent=0
    _
  %s13 = ssub.s32 1, %s11
  %s14 = scalar_select 0, %s13, %s11
  $region1: #{tpu_custom_call.1} parent=0
    #allocation2 [shape = 'u8[131072]{0}', space=vmem, size = 0x20000, scoped, tag = 'input window, operand 0']
    #allocation3 [shape = 's32[2]{0}', space=sflag, size = 0x8, scoped, tag = 'scoped memory for tpu_custom_call.1']
    #allocation4 [shape = 's32[2]{0}', space=sflag, size = 0x8, scoped, tag = 'scoped memory for tpu_custom_call.1']
    #allocation5 [shape = 'u8[32768]{0}', space=vmem, size = 0x8000, scoped, tag = 'input window, operand 1, single buffered']
    #allocation6 [shape = 's32[1]{0}', space=sflag, size = 0x4, scoped, tag = 'scoped memory for tpu_custom_call.1']
    #allocation7 [shape = 'u8[294912]{0}', space=vmem, size = 0x48000, scoped, tag = 'input window, operand 4, single buffered']
    #allocation8 [shape = 'u8[32768]{0}', space=vmem, size = 0x8000, scoped, tag = 'input window, operand 7, single buffered']
    #allocation9 [shape = 's32[1]{0}', space=sflag, size = 0x4, scoped, tag = 'scoped memory for tpu_custom_call.1']
    #allocation10 [shape = 'u8[131072]{0}', space=vmem, size = 0x20000, scoped, tag = 'output window, operand 0']
    %15 = vsyncpa [#allocation3], 0
    %s16 = scalar_lea.sflag [#allocation3], 1
    %17 = vsyncpa %s16, 0
    %18 = vsyncpa [#allocation6], 0
    %19 = vsyncpa [#allocation9], 0
    %20 = vsyncpa [#allocation4], 0
    %s21 = scalar_lea.sflag [#allocation4], 1
    %22 = vsyncpa %s21, 0
    loop: start=0, step=1, limit=4
    $region2: #{tpu_custom_call.1} parent=1 // loop_pre_header
      _
    $region3: #{tpu_custom_call.1} parent=1 // loop_header
      %s24 = sphi 0, %s28
      %p25 = scmp.ge.s32.totalorder %s24, 4
      %s34 = sphi 0, %s36
      %s37 = sphi 0, %s34
      %s38 = sphi 0, %s37
      %s54 = sphi 0, %s38
      %s58 = sphi 0, %s58
      %s60 = sphi 0, %s58
      %s61 = sphi 0, %s60
      %s75 = sphi 0, %s61
      %s79 = sphi 0, %s79
      %s81 = sphi 0, %s79
      %s82 = sphi 0, %s81
      %s96 = sphi 0, %s82
      %s100 = sphi 0, %s100
      %s102 = sphi 0, %s100
      %s103 = sphi 0, %s102
      %s117 = sphi 0, %s103
      %s121 = sphi 0, %s121
      %s123 = sphi 0, %s121
      %s124 = sphi 0, %s123
      %s138 = sphi 0, %s124
      %s142 = sphi 0, %s142
      %s144 = sphi 0, %s142
      %s145 = sphi 0, %s144
      %s159 = sphi 0, %s145
      %s163 = sphi 0, %s163
      %s165 = sphi 0, %s163
      %s166 = sphi 0, %s165
      %s180 = sphi 0, %s166
      %s184 = sphi 0, %s184
      %s186 = sphi 0, %s184
      %s187 = sphi 0, %s186
      %s201 = sphi 0, %s187
      %s205 = sphi 0, %s205
      %s207 = sphi 0, %s205
      %s208 = sphi 0, %s207
      %s222 = sphi 0, %s208
      %s226 = sphi 0, %s226
      %s228 = sphi 0, %s226
      %s229 = sphi 0, %s228
      %s243 = sphi 0, %s229
      %s249 = sphi 0, %s251
      %s252 = sphi 0, %s249
      %s253 = sphi 0, %s252
      %s269 = sphi 0, %s253
    $region4: #{tpu_custom_call.1} parent=1 // loop_header_branch
      %27 = sbr.rel (%p25) target = $region8
    $region5: #{tpu_custom_call.1} parent=1 // loop_body
      %s29 = ssub.s32 %s24, 1
      %s30 = ssub.s32 %s24, 2
      %s31 = sadd.s32 %s24, 1
      %s32 = ssub.s32 %s24, %s31
      %p33 = scmp.eq.s32.totalorder %s32, 0
      %s35 = sadd.s32 %s34, 1
      %s36 = scalar_select %p33, %s34, %s35
      %p39 = pneg %p33
      %p40 = scmp.eq.s32.totalorder %s24, 1
      %p41 = por %p39, %p40
      %p42 = scmp.ne.s32.totalorder %s34, %s37
      %p43 = scmp.eq.s32.totalorder %s24, 0
      %p44 = por %p42, %p43
      %p45 = scmp.ne.s32.totalorder %s34, %s37
      %p46 = scmp.eq.s32.totalorder %s29, 1
      %p47 = por %p45, %p46
      %p48 = scmp.ne.s32.totalorder %s37, %s38
      %p49 = scmp.eq.s32.totalorder %s29, 0
      %p50 = por %p48, %p49
      %p51 = scmp.ne.s32.totalorder %s37, %s38
      %p52 = scmp.eq.s32.totalorder %s30, 1
      %p53 = por %p51, %p52
      %p55 = scmp.ne.s32.totalorder %s38, %s54
      %p56 = scmp.eq.s32.totalorder %s30, 0
      %p57 = por %p55, %p56
      %s59 = sadd.s32 %s58, 1
      %p62 = scmp.eq.s32.totalorder %s24, 1
      %p63 = scmp.ne.s32.totalorder %s58, %s60
      %p64 = scmp.eq.s32.totalorder %s24, 0
      %p65 = por %p63, %p64
      %p66 = scmp.ne.s32.totalorder %s58, %s60
      %p67 = scmp.eq.s32.totalorder %s29, 1
      %p68 = por %p66, %p67
      %p69 = scmp.ne.s32.totalorder %s60, %s61
      %p70 = scmp.eq.s32.totalorder %s29, 0
      %p71 = por %p69, %p70
      %p72 = scmp.ne.s32.totalorder %s60, %s61
      %p73 = scmp.eq.s32.totalorder %s30, 1
      %p74 = por %p72, %p73
      %p76 = scmp.ne.s32.totalorder %s61, %s75
      %p77 = scmp.eq.s32.totalorder %s30, 0
      %p78 = por %p76, %p77
      %s80 = sadd.s32 %s79, 1
      %p83 = scmp.eq.s32.totalorder %s24, 1
      %p84 = scmp.ne.s32.totalorder %s79, %s81
      %p85 = scmp.eq.s32.totalorder %s24, 0
      %p86 = por %p84, %p85
      %p87 = scmp.ne.s32.totalorder %s79, %s81
      %p88 = scmp.eq.s32.totalorder %s29, 1
      %p89 = por %p87, %p88
      %p90 = scmp.ne.s32.totalorder %s81, %s82
      %p91 = scmp.eq.s32.totalorder %s29, 0
      %p92 = por %p90, %p91
      %p93 = scmp.ne.s32.totalorder %s81, %s82
      %p94 = scmp.eq.s32.totalorder %s30, 1
      %p95 = por %p93, %p94
      %p97 = scmp.ne.s32.totalorder %s82, %s96
      %p98 = scmp.eq.s32.totalorder %s30, 0
      %p99 = por %p97, %p98
      %s101 = sadd.s32 %s100, 1
      %p104 = scmp.eq.s32.totalorder %s24, 1
      %p105 = scmp.ne.s32.totalorder %s100, %s102
      %p106 = scmp.eq.s32.totalorder %s24, 0
      %p107 = por %p105, %p106
      %p108 = scmp.ne.s32.totalorder %s100, %s102
      %p109 = scmp.eq.s32.totalorder %s29, 1
      %p110 = por %p108, %p109
      %p111 = scmp.ne.s32.totalorder %s102, %s103
      %p112 = scmp.eq.s32.totalorder %s29, 0
      %p113 = por %p111, %p112
      %p114 = scmp.ne.s32.totalorder %s102, %s103
      %p115 = scmp.eq.s32.totalorder %s30, 1
      %p116 = por %p114, %p115
      %p118 = scmp.ne.s32.totalorder %s103, %s117
      %p119 = scmp.eq.s32.totalorder %s30, 0
      %p120 = por %p118, %p119
      %s122 = sadd.s32 %s121, 1
      %p125 = scmp.eq.s32.totalorder %s24, 1
      %p126 = scmp.ne.s32.totalorder %s121, %s123
      %p127 = scmp.eq.s32.totalorder %s24, 0
      %p128 = por %p126, %p127
      %p129 = scmp.ne.s32.totalorder %s121, %s123
      %p130 = scmp.eq.s32.totalorder %s29, 1
      %p131 = por %p129, %p130
      %p132 = scmp.ne.s32.totalorder %s123, %s124
      %p133 = scmp.eq.s32.totalorder %s29, 0
      %p134 = por %p132, %p133
      %p135 = scmp.ne.s32.totalorder %s123, %s124
      %p136 = scmp.eq.s32.totalorder %s30, 1
      %p137 = por %p135, %p136
      %p139 = scmp.ne.s32.totalorder %s124, %s138
      %p140 = scmp.eq.s32.totalorder %s30, 0
      %p141 = por %p139, %p140
      %s143 = sadd.s32 %s142, 1
      %p146 = scmp.eq.s32.totalorder %s24, 1
      %p147 = scmp.ne.s32.totalorder %s142, %s144
      %p148 = scmp.eq.s32.totalorder %s24, 0
      %p149 = por %p147, %p148
      %p150 = scmp.ne.s32.totalorder %s142, %s144
      %p151 = scmp.eq.s32.totalorder %s29, 1
      %p152 = por %p150, %p151
      %p153 = scmp.ne.s32.totalorder %s144, %s145
      %p154 = scmp.eq.s32.totalorder %s29, 0
      %p155 = por %p153, %p154
      %p156 = scmp.ne.s32.totalorder %s144, %s145
      %p157 = scmp.eq.s32.totalorder %s30, 1
      %p158 = por %p156, %p157
      %p160 = scmp.ne.s32.totalorder %s145, %s159
      %p161 = scmp.eq.s32.totalorder %s30, 0
      %p162 = por %p160, %p161
      %s164 = sadd.s32 %s163, 1
      %p167 = scmp.eq.s32.totalorder %s24, 1
      %p168 = scmp.ne.s32.totalorder %s163, %s165
      %p169 = scmp.eq.s32.totalorder %s24, 0
      %p170 = por %p168, %p169
      %p171 = scmp.ne.s32.totalorder %s163, %s165
      %p172 = scmp.eq.s32.totalorder %s29, 1
      %p173 = por %p171, %p172
      %p174 = scmp.ne.s32.totalorder %s165, %s166
      %p175 = scmp.eq.s32.totalorder %s29, 0
      %p176 = por %p174, %p175
      %p177 = scmp.ne.s32.totalorder %s165, %s166
      %p178 = scmp.eq.s32.totalorder %s30, 1
      %p179 = por %p177, %p178
      %p181 = scmp.ne.s32.totalorder %s166, %s180
      %p182 = scmp.eq.s32.totalorder %s30, 0
      %p183 = por %p181, %p182
      %s185 = sadd.s32 %s184, 1
      %p188 = scmp.eq.s32.totalorder %s24, 1
      %p189 = scmp.ne.s32.totalorder %s184, %s186
      %p190 = scmp.eq.s32.totalorder %s24, 0
      %p191 = por %p189, %p190
      %p192 = scmp.ne.s32.totalorder %s184, %s186
      %p193 = scmp.eq.s32.totalorder %s29, 1
      %p194 = por %p192, %p193
      %p195 = scmp.ne.s32.totalorder %s186, %s187
      %p196 = scmp.eq.s32.totalorder %s29, 0
      %p197 = por %p195, %p196
      %p198 = scmp.ne.s32.totalorder %s186, %s187
      %p199 = scmp.eq.s32.totalorder %s30, 1
      %p200 = por %p198, %p199
      %p202 = scmp.ne.s32.totalorder %s187, %s201
      %p203 = scmp.eq.s32.totalorder %s30, 0
      %p204 = por %p202, %p203
      %s206 = sadd.s32 %s205, 1
      %p209 = scmp.eq.s32.totalorder %s24, 1
      %p210 = scmp.ne.s32.totalorder %s205, %s207
      %p211 = scmp.eq.s32.totalorder %s24, 0
      %p212 = por %p210, %p211
      %p213 = scmp.ne.s32.totalorder %s205, %s207
      %p214 = scmp.eq.s32.totalorder %s29, 1
      %p215 = por %p213, %p214
      %p216 = scmp.ne.s32.totalorder %s207, %s208
      %p217 = scmp.eq.s32.totalorder %s29, 0
      %p218 = por %p216, %p217
      %p219 = scmp.ne.s32.totalorder %s207, %s208
      %p220 = scmp.eq.s32.totalorder %s30, 1
      %p221 = por %p219, %p220
      %p223 = scmp.ne.s32.totalorder %s208, %s222
      %p224 = scmp.eq.s32.totalorder %s30, 0
      %p225 = por %p223, %p224
      %s227 = sadd.s32 %s226, 1
      %p230 = scmp.eq.s32.totalorder %s24, 1
      %p231 = scmp.ne.s32.totalorder %s226, %s228
      %p232 = scmp.eq.s32.totalorder %s24, 0
      %p233 = por %p231, %p232
      %p234 = scmp.ne.s32.totalorder %s226, %s228
      %p235 = scmp.eq.s32.totalorder %s29, 1
      %p236 = por %p234, %p235
      %p237 = scmp.ne.s32.totalorder %s228, %s229
      %p238 = scmp.eq.s32.totalorder %s29, 0
      %p239 = por %p237, %p238
      %p240 = scmp.ne.s32.totalorder %s228, %s229
      %p241 = scmp.eq.s32.totalorder %s30, 1
      %p242 = por %p240, %p241
      %p244 = scmp.ne.s32.totalorder %s229, %s243
      %p245 = scmp.eq.s32.totalorder %s30, 0
      %p246 = por %p244, %p245
      %s247 = ssub.s32 %s24, %s31
      %p248 = scmp.eq.s32.totalorder %s247, 0
      %s250 = sadd.s32 %s249, 1
      %s251 = scalar_select %p248, %s249, %s250
      %p254 = pneg %p248
      %p255 = scmp.eq.s32.totalorder %s24, 1
      %p256 = por %p254, %p255
      %p257 = scmp.ne.s32.totalorder %s249, %s252
      %p258 = scmp.eq.s32.totalorder %s24, 0
      %p259 = por %p257, %p258
      %p260 = scmp.ne.s32.totalorder %s249, %s252
      %p261 = scmp.eq.s32.totalorder %s29, 1
      %p262 = por %p260, %p261
      %p263 = scmp.ne.s32.totalorder %s252, %s253
      %p264 = scmp.eq.s32.totalorder %s29, 0
      %p265 = por %p263, %p264
      %p266 = scmp.ne.s32.totalorder %s252, %s253
      %p267 = scmp.eq.s32.totalorder %s30, 1
      %p268 = por %p266, %p267
      %p270 = scmp.ne.s32.totalorder %s253, %s269
      %p271 = scmp.eq.s32.totalorder %s30, 0
      %p272 = por %p270, %p271
      %p273 = scmp.le.s32.totalorder 1, %s24
      %p274 = scmp.lt.s32.totalorder %s24, 3
      %p275 = pnand %p273, %p274
      %p276 = pneg %p275
      // Predicated region
      $region9: #{tpu_custom_call.1} parent=5 // pred_check
        _
      $region10: #{tpu_custom_call.1} parent=5 // pred_check_branch
        %278 = sbr.rel (%p275) target = $region12
      $region11: #{tpu_custom_call.1} parent=5 // pred_region
        %s279 = ssub.s32 %s24, 1
        // Predicated region
        $region13: #{tpu_custom_call.1} parent=11 // pred_check
          %p280 = pneg %p71
        $region14: #{tpu_custom_call.1} parent=11 // pred_check_branch
          %282 = sbr.rel (%p280) target = $region16
        $region15: #{tpu_custom_call.1} parent=11 // pred_region
          %s284 = ssub.s32 1024, 1024
          %285 = vsyncadd [#allocation6], %s284
          %s286 = sshll.u32 [#allocation5], 4
          %s287 = int_to_ptr.vmem [resolvable:$true] %s286
          %292 = dma.hbm_to_vmem [thread:$0]  %s1, 1024, %s287, [#allocation6], 64, 64, 4
        $region16: #{tpu_custom_call.1} parent=11 // pred_fallthru
          _
        // Predicated region
        $region17: #{tpu_custom_call.1} parent=11 // pred_check
          %p293 = pneg %p92
        $region18: #{tpu_custom_call.1} parent=11 // pred_check_branch
          %295 = sbr.rel (%p293) target = $region20
        $region19: #{tpu_custom_call.1} parent=11 // pred_region
          _
        $region20: #{tpu_custom_call.1} parent=11 // pred_fallthru
          _
        // Predicated region
        $region21: #{tpu_custom_call.1} parent=11 // pred_check
          %p296 = pneg %p113
        $region22: #{tpu_custom_call.1} parent=11 // pred_check_branch
          %298 = sbr.rel (%p296) target = $region24
        $region23: #{tpu_custom_call.1} parent=11 // pred_region
          _
        $region24: #{tpu_custom_call.1} parent=11 // pred_fallthru
          _
        // Predicated region
        $region25: #{tpu_custom_call.1} parent=11 // pred_check
          %p299 = pneg %p134
        $region26: #{tpu_custom_call.1} parent=11 // pred_check_branch
          %301 = sbr.rel (%p299) target = $region28
        $region27: #{tpu_custom_call.1} parent=11 // pred_region
          %s303 = ssub.s32 9216, 9216
          %304 = vsyncadd [#allocation6], %s303
          %s305 = sshll.u32 [#allocation7], 4
          %s306 = int_to_ptr.vmem [resolvable:$true] %s305
          %311 = dma.hbm_to_vmem [thread:$0]  %s4, 9216, %s306, [#allocation6], 64, 64, 4
        $region28: #{tpu_custom_call.1} parent=11 // pred_fallthru
          _
        // Predicated region
        $region29: #{tpu_custom_call.1} parent=11 // pred_check
          %p312 = pneg %p155
        $region30: #{tpu_custom_call.1} parent=11 // pred_check_branch
          %314 = sbr.rel (%p312) target = $region32
        $region31: #{tpu_custom_call.1} parent=11 // pred_region
          _
        $region32: #{tpu_custom_call.1} parent=11 // pred_fallthru
          _
        // Predicated region
        $region33: #{tpu_custom_call.1} parent=11 // pred_check
          %p315 = pneg %p176
        $region34: #{tpu_custom_call.1} parent=11 // pred_check_branch
          %317 = sbr.rel (%p315) target = $region36
        $region35: #{tpu_custom_call.1} parent=11 // pred_region
          _
        $region36: #{tpu_custom_call.1} parent=11 // pred_fallthru
          _
        // Predicated region
        $region37: #{tpu_custom_call.1} parent=11 // pred_check
          %p318 = pneg %p197
        $region38: #{tpu_custom_call.1} parent=11 // pred_check_branch
          %320 = sbr.rel (%p318) target = $region40
        $region39: #{tpu_custom_call.1} parent=11 // pred_region
          %s322 = ssub.s32 1024, 1024
          %323 = vsyncadd [#allocation9], %s322
          %s324 = sshll.u32 [#allocation8], 4
          %s325 = int_to_ptr.vmem [resolvable:$true] %s324
          %330 = dma.hbm_to_vmem [thread:$0]  %s7, 1024, %s325, [#allocation9], 64, 64, 4
        $region40: #{tpu_custom_call.1} parent=11 // pred_fallthru
          _
        // Predicated region
        $region41: #{tpu_custom_call.1} parent=11 // pred_check
          %p331 = pneg %p218
        $region42: #{tpu_custom_call.1} parent=11 // pred_check_branch
          %333 = sbr.rel (%p331) target = $region44
        $region43: #{tpu_custom_call.1} parent=11 // pred_region
          _
        $region44: #{tpu_custom_call.1} parent=11 // pred_fallthru
          _
        // Predicated region
        $region45: #{tpu_custom_call.1} parent=11 // pred_check
          %p334 = pneg %p239
        $region46: #{tpu_custom_call.1} parent=11 // pred_check_branch
          %336 = sbr.rel (%p334) target = $region48
        $region47: #{tpu_custom_call.1} parent=11 // pred_region
          _
        $region48: #{tpu_custom_call.1} parent=11 // pred_fallthru
          _
      $region12: #{tpu_custom_call.1} parent=5 // pred_fallthru
        _
      %p337 = scmp.lt.s32.totalorder %s24, 2
      // Predicated region
      $region49: #{tpu_custom_call.1} parent=5 // pred_check
        %p338 = pneg %p337
      $region50: #{tpu_custom_call.1} parent=5 // pred_check_branch
        %340 = sbr.rel (%p338) target = $region52
      $region51: #{tpu_custom_call.1} parent=5 // pred_region
        // Predicated region
        $region53: #{tpu_custom_call.1} parent=51 // pred_check
          %p341 = pneg %p44
        $region54: #{tpu_custom_call.1} parent=51 // pred_check_branch
          %343 = sbr.rel (%p341) target = $region56
        $region55: #{tpu_custom_call.1} parent=51 // pred_region
          %s344 = sand.u32 %s34, 1
          %s345 = scalar_lea.sflag [#allocation3], %s344
          %s346 = sand.u32 %s34, 1
          %s347 = smul.addr %s346, 128
          %s348 = scalar_lea.vmem [#allocation2], %s347
          %s349 = smul.u32 2, %s24
          %s351 = ssub.s32 2048, 2048
          %352 = vsyncadd %s345, %s351
          %s353 = smul.addr %s349, 8
          %s354 = smul.addr %s353, 128
          %s355 = scalar_lea.hbm %s0, %s354
          %s356 = sshll.u32 %s348, 4
          %s357 = int_to_ptr.vmem [resolvable:$true] %s356
          %362 = dma.hbm_to_vmem [thread:$0]  %s355, 2048, %s357, %s345, 128, 128, 8
        $region56: #{tpu_custom_call.1} parent=51 // pred_fallthru
          _
      $region52: #{tpu_custom_call.1} parent=5 // pred_fallthru
        _
      %p363 = scmp.le.s32.totalorder 1, %s24
      %p364 = scmp.lt.s32.totalorder %s24, 3
      %p365 = pnand %p363, %p364
      %p366 = pneg %p365
      // Predicated region
      $region57: #{tpu_custom_call.1} parent=5 // pred_check
        _
      $region58: #{tpu_custom_call.1} parent=5 // pred_check_branch
        %368 = sbr.rel (%p365) target = $region60
      $region59: #{tpu_custom_call.1} parent=5 // pred_region
        %s369 = ssub.s32 %s24, 1
        %s370 = sand.u32 %s37, 1
        %s371 = scalar_lea.sflag [#allocation3], %s370
        %s372 = sand.u32 %s37, 1
        %s373 = smul.addr %s372, 128
        %s374 = scalar_lea.vmem [#allocation2], %s373
        // Predicated region
        $region61: #{tpu_custom_call.1} parent=59 // pred_check
          %p375 = pneg %p50
        $region62: #{tpu_custom_call.1} parent=59 // pred_check_branch
          %377 = sbr.rel (%p375) target = $region64
        $region63: #{tpu_custom_call.1} parent=59 // pred_region
          %378 = dma.done %s371, 2048
        $region64: #{tpu_custom_call.1} parent=59 // pred_fallthru
          _
        // Predicated region
        $region65: #{tpu_custom_call.1} parent=59 // pred_check
          %p379 = pneg %p71
        $region66: #{tpu_custom_call.1} parent=59 // pred_check_branch
          %381 = sbr.rel (%p379) target = $region68
        $region67: #{tpu_custom_call.1} parent=59 // pred_region
          %382 = dma.done [#allocation6], 1024
        $region68: #{tpu_custom_call.1} parent=59 // pred_fallthru
          _
        // Predicated region
        $region69: #{tpu_custom_call.1} parent=59 // pred_check
          %p383 = pneg %p134
        $region70: #{tpu_custom_call.1} parent=59 // pred_check_branch
          %385 = sbr.rel (%p383) target = $region72
        $region71: #{tpu_custom_call.1} parent=59 // pred_region
          %386 = dma.done [#allocation6], 9216
        $region72: #{tpu_custom_call.1} parent=59 // pred_fallthru
          _
        // Predicated region
        $region73: #{tpu_custom_call.1} parent=59 // pred_check
          %p387 = pneg %p197
        $region74: #{tpu_custom_call.1} parent=59 // pred_check_branch
          %389 = sbr.rel (%p387) target = $region76
        $region75: #{tpu_custom_call.1} parent=59 // pred_region
          %390 = dma.done [#allocation9], 1024
        $region76: #{tpu_custom_call.1} parent=59 // pred_fallthru
          _
        %s391 = sand.u32 %s37, 1
        %s392 = scalar_lea.sflag [#allocation3], %s391
        %s393 = sand.u32 %s37, 1
        %s394 = smul.addr %s393, 128
        %s395 = scalar_lea.vmem [#allocation2], %s394
        %p396 = pneg %p50
        %p397 = pneg %p47
        %p398 = pneg %p71
        %p399 = pneg %p68
        %p400 = pneg %p92
        %p401 = pneg %p89
        %p402 = pneg %p113
        %p403 = pneg %p110
        %p404 = pneg %p134
        %p405 = pneg %p131
        %p406 = pneg %p155
        %p407 = pneg %p152
        %p408 = pneg %p176
        %p409 = pneg %p173
        %p410 = pneg %p197
        %p411 = pneg %p194
        %p412 = pneg %p218
        %p413 = pneg %p215
        %p414 = pneg %p239
        %p415 = pneg %p236
        %p416 = pneg %p265
        %p417 = pneg %p262
        %s418 = sand.u32 %s252, 1
        %s419 = scalar_lea.sflag [#allocation4], %s418
        %s420 = sand.u32 %s252, 1
        %s421 = smul.addr %s420, 128
        %s422 = scalar_lea.vmem [#allocation10], %s421
        %s423 = smul.u32 2, %s29
        %s424 = smul.u32 2, %s29
        %v426 = vld [vmem:[%s374] sm:$0xff]
        %v427 = vld [vmem:[%s374 + $0x8] sm:$0xff]
        %v428 = vld [vmem:[%s374 + $0x10] sm:$0xff]
        %v429 = vld [vmem:[%s374 + $0x18] sm:$0xff]
        %v430 = vld [vmem:[%s374 + $0x20] sm:$0xff]
        %v431 = vld [vmem:[%s374 + $0x28] sm:$0xff]
        %v432 = vld [vmem:[%s374 + $0x30] sm:$0xff]
        %v433 = vld [vmem:[%s374 + $0x38] sm:$0xff]
        %v434 = vld [vmem:[%s374 + $0x40] sm:$0xff]
        %v435 = vld [vmem:[%s374 + $0x48] sm:$0xff]
        %v436 = vld [vmem:[%s374 + $0x50] sm:$0xff]
        %v437 = vld [vmem:[%s374 + $0x58] sm:$0xff]
        %v438 = vld [vmem:[%s374 + $0x60] sm:$0xff]
        %v439 = vld [vmem:[%s374 + $0x68] sm:$0xff]
        %v440 = vld [vmem:[%s374 + $0x70] sm:$0xff]
        %v441 = vld [vmem:[%s374 + $0x78] sm:$0xff]
        %v442 = vpack.c.bf16 %v427, %v426
        %v443 = vpack.c.bf16 %v429, %v428
        %v444 = vpack.c.bf16 %v431, %v430
        %v445 = vpack.c.bf16 %v433, %v432
        %v446 = vpack.c.bf16 %v435, %v434
        %v447 = vpack.c.bf16 %v437, %v436
        %v448 = vpack.c.bf16 %v439, %v438
        %v449 = vpack.c.bf16 %v441, %v440
        %v450 = vld [vmem:[#allocation5] sm:$0xf]
        %v451 = vld [vmem:[#allocation5 + $0x4] sm:$0xf]
        %v452 = vld [vmem:[#allocation5 + $0x8] sm:$0xf]
        %v453 = vld [vmem:[#allocation5 + $0xc] sm:$0xf]
        %v454 = vld [vmem:[#allocation5 + $0x10] sm:$0xf]
        %v455 = vld [vmem:[#allocation5 + $0x14] sm:$0xf]
        %v456 = vld [vmem:[#allocation5 + $0x18] sm:$0xf]
        %v457 = vld [vmem:[#allocation5 + $0x1c] sm:$0xf]
        %v458 = vld [vmem:[#allocation5 + $0x20] sm:$0xf]
        %v459 = vld [vmem:[#allocation5 + $0x24] sm:$0xf]
        %v460 = vld [vmem:[#allocation5 + $0x28] sm:$0xf]
        %v461 = vld [vmem:[#allocation5 + $0x2c] sm:$0xf]
        %v462 = vld [vmem:[#allocation5 + $0x30] sm:$0xf]
        %v463 = vld [vmem:[#allocation5 + $0x34] sm:$0xf]
        %v464 = vld [vmem:[#allocation5 + $0x38] sm:$0xf]
        %v465 = vld [vmem:[#allocation5 + $0x3c] sm:$0xf]
        %v482 = vunpack.c.l.b16 %v450
        %v483 = vunpack.c.l.b16 %v451
        %v484 = vunpack.c.l.b16 %v452
        %v485 = vunpack.c.l.b16 %v453
        %v486 = vunpack.c.l.b16 %v454
        %v487 = vunpack.c.l.b16 %v455
        %v488 = vunpack.c.l.b16 %v456
        %v489 = vunpack.c.l.b16 %v457
        %v490 = vunpack.c.l.b16 %v458
        %v491 = vunpack.c.l.b16 %v459
        %v492 = vunpack.c.l.b16 %v460
        %v493 = vunpack.c.l.b16 %v461
        %v494 = vunpack.c.l.b16 %v462
        %v495 = vunpack.c.l.b16 %v463
        %v496 = vunpack.c.l.b16 %v464
        %v497 = vunpack.c.l.b16 %v465
        %v498 = vpack.c.b16 %v483, %v482
        %v499 = vpack.c.b16 %v485, %v484
        %v500 = vpack.c.b16 %v487, %v486
        %v501 = vpack.c.b16 %v489, %v488
        %v502 = vpack.c.b16 %v491, %v490
        %v503 = vpack.c.b16 %v493, %v492
        %v504 = vpack.c.b16 %v495, %v494
        %v505 = vpack.c.b16 %v497, %v496
        %514 = vmatprep.subr.bf16.mxu0 0
        %515 = vmatpush1.bf16.msra.mxu0 %v505
        %516 = vmatprep.subr.bf16.mxu0 0
        %517 = vmatpush1.bf16.msra.mxu0 %v504
        %518 = vmatprep.subr.bf16.mxu0 0
        %519 = vmatpush1.bf16.msra.mxu0 %v503
        %520 = vmatprep.subr.bf16.mxu0 0
        %521 = vmatpush1.bf16.msra.mxu0 %v502
        %522 = vmatprep.subr.bf16.mxu0 0
        %523 = vmatpush1.bf16.msra.mxu0 %v501
        %524 = vmatprep.subr.bf16.mxu0 0
        %525 = vmatpush1.bf16.msra.mxu0 %v500
        %526 = vmatprep.subr.bf16.mxu0 0
        %527 = vmatpush1.bf16.msra.mxu0 %v499
        %528 = vmatprep.subr.bf16.mxu0 0
        %529 = vmatpush1.bf16.msra.mxu0 %v498
        %530 = vmatprep.subr.bf16.mxu0 0
        %531 = vmatpush2.bf16.msra.mxu0 0
        %532 = vmatprep.subr.bf16.mxu0 0
        %533 = vmatpush2.bf16.msra.mxu0 0
        %534 = vmatprep.subr.bf16.mxu0 0
        %535 = vmatpush2.bf16.msra.mxu0 0
        %536 = vmatprep.subr.bf16.mxu0 0
        %537 = vmatpush2.bf16.msra.mxu0 0
        %538 = vmatprep.subr.bf16.mxu0 0
        %539 = vmatpush2.bf16.msra.mxu0 0
        %540 = vmatprep.subr.bf16.mxu0 0
        %541 = vmatpush2.bf16.msra.mxu0 0
        %542 = vmatprep.subr.bf16.mxu0 0
        %543 = vmatpush2.bf16.msra.mxu0 0
        %544 = vmatprep.subr.bf16.mxu0 0
        %545 = vmatpush2.bf16.msra.mxu0 0
        %546 = vmatprep.mubr.bf16.mxu0 0
        %547 = vmatmul.mubr.bf16.gmra.mxu0 %v442
        %v548 = vpop.f32.mrf.mxu0
        %v549 = vadd.f32 0.0, %v548
        %v550 = vpop.f32.mrf.mxu0
        %v551 = vpop.f32.mrf.mxu0
        %v552 = vadd.f32 0.0, %v551
        %v553 = vpop.f32.mrf.mxu0
        %554 = vmatprep.mubr.bf16.mxu0 0
        %555 = vmatmul.mubr.bf16.gmra.mxu0 %v443
        %v556 = vpop.f32.mrf.mxu0
        %v557 = vadd.f32 0.0, %v556
        %v558 = vpop.f32.mrf.mxu0
        %v559 = vpop.f32.mrf.mxu0
        %v560 = vadd.f32 0.0, %v559
        %v561 = vpop.f32.mrf.mxu0
        %562 = vmatprep.mubr.bf16.mxu0 0
        %563 = vmatmul.mubr.bf16.gmra.mxu0 %v444
        %v564 = vpop.f32.mrf.mxu0
        %v565 = vadd.f32 0.0, %v564
        %v566 = vpop.f32.mrf.mxu0
        %v567 = vpop.f32.mrf.mxu0
        %v568 = vadd.f32 0.0, %v567
        %v569 = vpop.f32.mrf.mxu0
        %570 = vmatprep.mubr.bf16.mxu0 0
        %571 = vmatmul.mubr.bf16.gmra.mxu0 %v445
        %v572 = vpop.f32.mrf.mxu0
        %v573 = vadd.f32 0.0, %v572
        %v574 = vpop.f32.mrf.mxu0
        %v575 = vpop.f32.mrf.mxu0
        %v576 = vadd.f32 0.0, %v575
        %v577 = vpop.f32.mrf.mxu0
        %578 = vmatprep.mubr.bf16.mxu0 0
        %579 = vmatmul.mubr.bf16.gmra.mxu0 %v446
        %v580 = vpop.f32.mrf.mxu0
        %v581 = vadd.f32 0.0, %v580
        %v582 = vpop.f32.mrf.mxu0
        %v583 = vpop.f32.mrf.mxu0
        %v584 = vadd.f32 0.0, %v583
        %v585 = vpop.f32.mrf.mxu0
        %586 = vmatprep.mubr.bf16.mxu0 0
        %587 = vmatmul.mubr.bf16.gmra.mxu0 %v447
        %v588 = vpop.f32.mrf.mxu0
        %v589 = vadd.f32 0.0, %v588
        %v590 = vpop.f32.mrf.mxu0
        %v591 = vpop.f32.mrf.mxu0
        %v592 = vadd.f32 0.0, %v591
        %v593 = vpop.f32.mrf.mxu0
        %594 = vmatprep.mubr.bf16.mxu0 0
        %595 = vmatmul.mubr.bf16.gmra.mxu0 %v448
        %v596 = vpop.f32.mrf.mxu0
        %v597 = vadd.f32 0.0, %v596
        %v598 = vpop.f32.mrf.mxu0
        %v599 = vpop.f32.mrf.mxu0
        %v600 = vadd.f32 0.0, %v599
        %v601 = vpop.f32.mrf.mxu0
        %602 = vmatprep.mubr.bf16.mxu0 0
        %603 = vmatmul.mubr.bf16.gmra.mxu0 %v449
        %v604 = vpop.f32.mrf.mxu0
        %v605 = vadd.f32 0.0, %v604
        %v606 = vpop.f32.mrf.mxu0
        %v607 = vpop.f32.mrf.mxu0
        %v608 = vadd.f32 0.0, %v607
        %v609 = vpop.f32.mrf.mxu0
        %610 = vdwg.mxu0
        %v611 = vld [vmem:[%s2] sm:$0x1]
        %v612 = vld [vmem:[%s3] sm:$0x1]
        %v613 = vadd.f32 %v549, %v552
        %v614 = vadd.f32 %v613, %v557
        %v615 = vadd.f32 %v614, %v560
        %v616 = vadd.f32 %v615, %v565
        %v617 = vadd.f32 %v616, %v568
        %v618 = vadd.f32 %v617, %v573
        %v619 = vadd.f32 %v618, %v576
        %v620 = vrot.slane %v619, 4
        %v621 = vadd.f32 %v619, %v620
        %v622 = vrot.slane %v621, 2
        %v623 = vadd.f32 %v621, %v622
        %v624 = vrot.slane %v623, 1
        %v625 = vadd.f32 %v623, %v624
        %v626 = vadd.f32 %v581, %v584
        %v627 = vadd.f32 %v626, %v589
        %v628 = vadd.f32 %v627, %v592
        %v629 = vadd.f32 %v628, %v597
        %v630 = vadd.f32 %v629, %v600
        %v631 = vadd.f32 %v630, %v605
        %v632 = vadd.f32 %v631, %v608
        %v633 = vrot.slane %v632, 4
        %v634 = vadd.f32 %v632, %v633
        %v635 = vrot.slane %v634, 2
        %v636 = vadd.f32 %v634, %v635
        %v637 = vrot.slane %v636, 1
        %v638 = vadd.f32 %v636, %v637
        %v639 = vrcp.pop 64.0
        %v640 = vmul.f32 %v625, %v639
        %v641 = vmul.f32 %v638, %v639
        %v642 = vmul.f32 %v549, %v549
        %v643 = vmul.f32 %v552, %v552
        %v644 = vmul.f32 %v557, %v557
        %v645 = vmul.f32 %v560, %v560
        %v646 = vmul.f32 %v565, %v565
        %v647 = vmul.f32 %v568, %v568
        %v648 = vmul.f32 %v573, %v573
        %v649 = vmul.f32 %v576, %v576
        %v650 = vmul.f32 %v581, %v581
        %v651 = vmul.f32 %v584, %v584
        %v652 = vmul.f32 %v589, %v589
        %v653 = vmul.f32 %v592, %v592
        %v654 = vmul.f32 %v597, %v597
        %v655 = vmul.f32 %v600, %v600
        %v656 = vmul.f32 %v605, %v605
        %v657 = vmul.f32 %v608, %v608
        %v658 = vadd.f32 %v642, %v643
        %v659 = vadd.f32 %v658, %v644
        %v660 = vadd.f32 %v659, %v645
        %v661 = vadd.f32 %v660, %v646
        %v662 = vadd.f32 %v661, %v647
        %v663 = vadd.f32 %v662, %v648
        %v664 = vadd.f32 %v663, %v649
        %v665 = vrot.slane %v664, 4
        %v666 = vadd.f32 %v664, %v665
        %v667 = vrot.slane %v666, 2
        %v668 = vadd.f32 %v666, %v667
        %v669 = vrot.slane %v668, 1
        %v670 = vadd.f32 %v668, %v669
        %v671 = vadd.f32 %v650, %v651
        %v672 = vadd.f32 %v671, %v652
        %v673 = vadd.f32 %v672, %v653
        %v674 = vadd.f32 %v673, %v654
        %v675 = vadd.f32 %v674, %v655
        %v676 = vadd.f32 %v675, %v656
        %v677 = vadd.f32 %v676, %v657
        %v678 = vrot.slane %v677, 4
        %v679 = vadd.f32 %v677, %v678
        %v680 = vrot.slane %v679, 2
        %v681 = vadd.f32 %v679, %v680
        %v682 = vrot.slane %v681, 1
        %v683 = vadd.f32 %v681, %v682
        %v684 = vmul.f32 %v670, %v639
        %v685 = vmul.f32 %v683, %v639
        %v686 = vmul.f32 %v640, %v640
        %v687 = vmul.f32 %v641, %v641
        %v688 = vsub.f32 %v684, %v686
        %v689 = vsub.f32 %v685, %v687
        %v690 = vmax.f32 %v688, 0.0
        %v691 = vmax.f32 %v689, 0.0
        %v692 = vsub.f32 %v549, %v640
        %v693 = vsub.f32 %v552, %v640
        %v694 = vsub.f32 %v557, %v640
        %v695 = vsub.f32 %v560, %v640
        %v696 = vsub.f32 %v565, %v640
        %v697 = vsub.f32 %v568, %v640
        %v698 = vsub.f32 %v573, %v640
        %v699 = vsub.f32 %v576, %v640
        %v700 = vsub.f32 %v581, %v641
        %v701 = vsub.f32 %v584, %v641
        %v702 = vsub.f32 %v589, %v641
        %v703 = vsub.f32 %v592, %v641
        %v704 = vsub.f32 %v597, %v641
        %v705 = vsub.f32 %v600, %v641
        %v706 = vsub.f32 %v605, %v641
        %v707 = vsub.f32 %v608, %v641
        %v708 = vadd.f32 %v690, 1e-05
        %v709 = vadd.f32 %v691, 1e-05
        %v710 = vrsqrt.pop %v708
        %v711 = vrsqrt.pop %v709
        %v712 = vmul.f32 %v692, %v710
        %v713 = vmul.f32 %v693, %v710
        %v714 = vmul.f32 %v694, %v710
        %v715 = vmul.f32 %v695, %v710
        %v716 = vmul.f32 %v696, %v710
        %v717 = vmul.f32 %v697, %v710
        %v718 = vmul.f32 %v698, %v710
        %v719 = vmul.f32 %v699, %v710
        %v720 = vmul.f32 %v700, %v711
        %v721 = vmul.f32 %v701, %v711
        %v722 = vmul.f32 %v702, %v711
        %v723 = vmul.f32 %v703, %v711
        %v724 = vmul.f32 %v704, %v711
        %v725 = vmul.f32 %v705, %v711
        %v726 = vmul.f32 %v706, %v711
        %v727 = vmul.f32 %v707, %v711
        %v729 = vlaneseq
        %v730 = vshrl.u32 %v729, 7
        %v731 = vsub.s32 0, %v730
        %v732 = vrot.slane %v611, %v731
        %v734 = vmul.f32 %v712, %v732
        %v735 = vmul.f32 %v713, %v732
        %v736 = vmul.f32 %v714, %v732
        %v737 = vmul.f32 %v715, %v732
        %v738 = vmul.f32 %v716, %v732
        %v739 = vmul.f32 %v717, %v732
        %v740 = vmul.f32 %v718, %v732
        %v741 = vmul.f32 %v719, %v732
        %v742 = vmul.f32 %v720, %v732
        %v743 = vmul.f32 %v721, %v732
        %v744 = vmul.f32 %v722, %v732
        %v745 = vmul.f32 %v723, %v732
        %v746 = vmul.f32 %v724, %v732
        %v747 = vmul.f32 %v725, %v732
        %v748 = vmul.f32 %v726, %v732
        %v749 = vmul.f32 %v727, %v732
        %v751 = vlaneseq
        %v752 = vshrl.u32 %v751, 7
        %v753 = vsub.s32 0, %v752
        %v754 = vrot.slane %v612, %v753
        %v756 = vadd.f32 %v734, %v754
        %v757 = vadd.f32 %v735, %v754
        %v758 = vadd.f32 %v736, %v754
        %v759 = vadd.f32 %v737, %v754
        %v760 = vadd.f32 %v738, %v754
        %v761 = vadd.f32 %v739, %v754
        %v762 = vadd.f32 %v740, %v754
        %v763 = vadd.f32 %v741, %v754
        %v764 = vadd.f32 %v742, %v754
        %v765 = vadd.f32 %v743, %v754
        %v766 = vadd.f32 %v744, %v754
        %v767 = vadd.f32 %v745, %v754
        %v768 = vadd.f32 %v746, %v754
        %v769 = vadd.f32 %v747, %v754
        %v770 = vadd.f32 %v748, %v754
        %v771 = vadd.f32 %v749, %v754
        %v772 = vmax.f32 %v756, 0.0
        %v773 = vmax.f32 %v757, 0.0
        %v774 = vmax.f32 %v758, 0.0
        %v775 = vmax.f32 %v759, 0.0
        %v776 = vmax.f32 %v760, 0.0
        %v777 = vmax.f32 %v761, 0.0
        %v778 = vmax.f32 %v762, 0.0
        %v779 = vmax.f32 %v763, 0.0
        %v780 = vmax.f32 %v764, 0.0
        %v781 = vmax.f32 %v765, 0.0
        %v782 = vmax.f32 %v766, 0.0
        %v783 = vmax.f32 %v767, 0.0
        %v784 = vmax.f32 %v768, 0.0
        %v785 = vmax.f32 %v769, 0.0
        %v786 = vmax.f32 %v770, 0.0
        %v787 = vmax.f32 %v771, 0.0
        %v788 = vlaneseq
        %v789 = vshrl.u32 %v788, 7
        %vm790 = vcmp.gt.s32.totalorder %v789, 0
        %v791 = vrot.slane %v772, 7
        %v792 = vrot.slane %v773, 7
        %v793 = vrot.slane %v774, 7
        %v794 = vrot.slane %v775, 7
        %v795 = vrot.slane %v776, 7
        %v796 = vrot.slane %v777, 7
        %v797 = vrot.slane %v778, 7
        %v798 = vrot.slane %v779, 7
        %v799 = vrot.slane %v780, 7
        %v800 = vrot.slane %v781, 7
        %v801 = vrot.slane %v782, 7
        %v802 = vrot.slane %v783, 7
        %v803 = vrot.slane %v784, 7
        %v804 = vrot.slane %v785, 7
        %v805 = vrot.slane %v786, 7
        %v806 = vrot.slane %v787, 7
        %v807 = vsel %vm790, 1, 0
        %vm808 = vcmp.eq.s32.totalorder %v807, 1
        %v809 = vsel %vm808, %v791, 0.0
        %v810 = vsel %vm808, %v792, 0.0
        %v811 = vsel %vm808, %v793, 0.0
        %v812 = vsel %vm808, %v794, 0.0
        %v813 = vsel %vm808, %v795, 0.0
        %v814 = vsel %vm808, %v796, 0.0
        %v815 = vsel %vm808, %v797, 0.0
        %v816 = vsel %vm808, %v798, 0.0
        %v817 = vsel %vm808, %v799, 0.0
        %v818 = vsel %vm808, %v800, 0.0
        %v819 = vsel %vm808, %v801, 0.0
        %v820 = vsel %vm808, %v802, 0.0
        %v821 = vsel %vm808, %v803, 0.0
        %v822 = vsel %vm808, %v804, 0.0
        %v823 = vsel %vm808, %v805, 0.0
        %v824 = vsel %vm808, %v806, 0.0
        %vm825 = vcmp.lt.s32.totalorder %v789, 7
        %v826 = vrot.slane %v772, 1
        %v827 = vrot.slane %v773, 1
        %v828 = vrot.slane %v774, 1
        %v829 = vrot.slane %v775, 1
        %v830 = vrot.slane %v776, 1
        %v831 = vrot.slane %v777, 1
        %v832 = vrot.slane %v778, 1
        %v833 = vrot.slane %v779, 1
        %v834 = vrot.slane %v780, 1
        %v835 = vrot.slane %v781, 1
        %v836 = vrot.slane %v782, 1
        %v837 = vrot.slane %v783, 1
        %v838 = vrot.slane %v784, 1
        %v839 = vrot.slane %v785, 1
        %v840 = vrot.slane %v786, 1
        %v841 = vrot.slane %v787, 1
        %v842 = vsel %vm825, 1, 0
        %vm843 = vcmp.eq.s32.totalorder %v842, 1
        %v844 = vsel %vm843, %v826, 0.0
        %v845 = vsel %vm843, %v827, 0.0
        %v846 = vsel %vm843, %v828, 0.0
        %v847 = vsel %vm843, %v829, 0.0
        %v848 = vsel %vm843, %v830, 0.0
        %v849 = vsel %vm843, %v831, 0.0
        %v850 = vsel %vm843, %v832, 0.0
        %v851 = vsel %vm843, %v833, 0.0
        %v852 = vsel %vm843, %v834, 0.0
        %v853 = vsel %vm843, %v835, 0.0
        %v854 = vsel %vm843, %v836, 0.0
        %v855 = vsel %vm843, %v837, 0.0
        %v856 = vsel %vm843, %v838, 0.0
        %v857 = vsel %vm843, %v839, 0.0
        %v858 = vsel %vm843, %v840, 0.0
        %v859 = vsel %vm843, %v841, 0.0
        %v860 = vpack.c.bf16 %v809, %v809
        %v861 = vpack.c.bf16 %v810, %v810
        %v862 = vpack.c.bf16 %v811, %v811
        %v863 = vpack.c.bf16 %v812, %v812
        %v864 = vpack.c.bf16 %v813, %v813
        %v865 = vpack.c.bf16 %v814, %v814
        %v866 = vpack.c.bf16 %v815, %v815
        %v867 = vpack.c.bf16 %v816, %v816
        %v868 = vpack.c.bf16 %v817, %v817
        %v869 = vpack.c.bf16 %v818, %v818
        %v870 = vpack.c.bf16 %v819, %v819
        %v871 = vpack.c.bf16 %v820, %v820
        %v872 = vpack.c.bf16 %v821, %v821
        %v873 = vpack.c.bf16 %v822, %v822
        %v874 = vpack.c.bf16 %v823, %v823
        %v875 = vpack.c.bf16 %v824, %v824
        %v876 = vpack.c.bf16 %v772, %v772
        %v877 = vpack.c.bf16 %v773, %v773
        %v878 = vpack.c.bf16 %v774, %v774
        %v879 = vpack.c.bf16 %v775, %v775
        %v880 = vpack.c.bf16 %v776, %v776
        %v881 = vpack.c.bf16 %v777, %v777
        %v882 = vpack.c.bf16 %v778, %v778
        %v883 = vpack.c.bf16 %v779, %v779
        %v884 = vpack.c.bf16 %v780, %v780
        %v885 = vpack.c.bf16 %v781, %v781
        %v886 = vpack.c.bf16 %v782, %v782
        %v887 = vpack.c.bf16 %v783, %v783
        %v888 = vpack.c.bf16 %v784, %v784
        %v889 = vpack.c.bf16 %v785, %v785
        %v890 = vpack.c.bf16 %v786, %v786
        %v891 = vpack.c.bf16 %v787, %v787
        %v892 = vpack.c.bf16 %v844, %v844
        %v893 = vpack.c.bf16 %v845, %v845
        %v894 = vpack.c.bf16 %v846, %v846
        %v895 = vpack.c.bf16 %v847, %v847
        %v896 = vpack.c.bf16 %v848, %v848
        %v897 = vpack.c.bf16 %v849, %v849
        %v898 = vpack.c.bf16 %v850, %v850
        %v899 = vpack.c.bf16 %v851, %v851
        %v900 = vpack.c.bf16 %v852, %v852
        %v901 = vpack.c.bf16 %v853, %v853
        %v902 = vpack.c.bf16 %v854, %v854
        %v903 = vpack.c.bf16 %v855, %v855
        %v904 = vpack.c.bf16 %v856, %v856
        %v905 = vpack.c.bf16 %v857, %v857
        %v906 = vpack.c.bf16 %v858, %v858
        %v907 = vpack.c.bf16 %v859, %v859
        %v957 = vunpack.c.l.b16 0
        %v958 = vunpack.c.l.b16 %v860
        %v959 = vunpack.c.l.b16 %v876
        %v960 = vunpack.c.l.b16 %v892
        %v961 = vunpack.c.l.b16 %v861
        %v962 = vunpack.c.l.b16 %v877
        %v963 = vunpack.c.l.b16 %v893
        %v964 = vunpack.c.l.b16 %v862
        %v965 = vunpack.c.l.b16 %v878
        %v966 = vunpack.c.l.b16 %v894
        %v967 = vunpack.c.l.b16 %v863
        %v968 = vunpack.c.l.b16 %v879
        %v969 = vunpack.c.l.b16 %v895
        %v970 = vunpack.c.l.b16 %v864
        %v971 = vunpack.c.l.b16 %v880
        %v972 = vunpack.c.l.b16 %v896
        %v973 = vunpack.c.l.b16 %v865
        %v974 = vunpack.c.l.b16 %v881
        %v975 = vunpack.c.l.b16 %v897
        %v976 = vunpack.c.l.b16 %v866
        %v977 = vunpack.c.l.b16 %v882
        %v978 = vunpack.c.l.b16 %v898
        %v979 = vunpack.c.l.b16 %v867
        %v980 = vunpack.c.l.b16 %v883
        %v981 = vunpack.c.l.b16 %v899
        %v982 = vunpack.c.l.b16 %v868
        %v983 = vunpack.c.l.b16 %v884
        %v984 = vunpack.c.l.b16 %v900
        %v985 = vunpack.c.l.b16 %v869
        %v986 = vunpack.c.l.b16 %v885
        %v987 = vunpack.c.l.b16 %v901
        %v988 = vunpack.c.l.b16 %v870
        %v989 = vunpack.c.l.b16 %v886
        %v990 = vunpack.c.l.b16 %v902
        %v991 = vunpack.c.l.b16 %v871
        %v992 = vunpack.c.l.b16 %v887
        %v993 = vunpack.c.l.b16 %v903
        %v994 = vunpack.c.l.b16 %v872
        %v995 = vunpack.c.l.b16 %v888
        %v996 = vunpack.c.l.b16 %v904
        %v997 = vunpack.c.l.b16 %v873
        %v998 = vunpack.c.l.b16 %v889
        %v999 = vunpack.c.l.b16 %v905
        %v1000 = vunpack.c.l.b16 %v874
        %v1001 = vunpack.c.l.b16 %v890
        %v1002 = vunpack.c.l.b16 %v906
        %v1003 = vunpack.c.l.b16 %v875
        %v1004 = vunpack.c.l.b16 %v891
        %v1005 = vunpack.c.l.b16 %v907
        %v1006 = vld [vmem:[#allocation7] sm:$0xf]
        %v1007 = vld [vmem:[#allocation7 + $0x4] sm:$0xf]
        %v1008 = vld [vmem:[#allocation7 + $0x8] sm:$0xf]
        %v1009 = vld [vmem:[#allocation7 + $0xc] sm:$0xf]
        %v1010 = vld [vmem:[#allocation7 + $0x10] sm:$0xf]
        %v1011 = vld [vmem:[#allocation7 + $0x14] sm:$0xf]
        %v1012 = vld [vmem:[#allocation7 + $0x18] sm:$0xf]
        %v1013 = vld [vmem:[#allocation7 + $0x1c] sm:$0xf]
        %v1014 = vld [vmem:[#allocation7 + $0x20] sm:$0xf]
        %v1015 = vld [vmem:[#allocation7 + $0x24] sm:$0xf]
        %v1016 = vld [vmem:[#allocation7 + $0x28] sm:$0xf]
        %v1017 = vld [vmem:[#allocation7 + $0x2c] sm:$0xf]
        %v1018 = vld [vmem:[#allocation7 + $0x30] sm:$0xf]
        %v1019 = vld [vmem:[#allocation7 + $0x34] sm:$0xf]
        %v1020 = vld [vmem:[#allocation7 + $0x38] sm:$0xf]
        %v1021 = vld [vmem:[#allocation7 + $0x3c] sm:$0xf]
        %v1022 = vld [vmem:[#allocation7 + $0x40] sm:$0xf]
        %v1023 = vld [vmem:[#allocation7 + $0x44] sm:$0xf]
        %v1024 = vld [vmem:[#allocation7 + $0x48] sm:$0xf]
        %v1025 = vld [vmem:[#allocation7 + $0x4c] sm:$0xf]
        %v1026 = vld [vmem:[#allocation7 + $0x50] sm:$0xf]
        %v1027 = vld [vmem:[#allocation7 + $0x54] sm:$0xf]
        %v1028 = vld [vmem:[#allocation7 + $0x58] sm:$0xf]
        %v1029 = vld [vmem:[#allocation7 + $0x5c] sm:$0xf]
        %v1030 = vld [vmem:[#allocation7 + $0x60] sm:$0xf]
        %v1031 = vld [vmem:[#allocation7 + $0x64] sm:$0xf]
        %v1032 = vld [vmem:[#allocation7 + $0x68] sm:$0xf]
        %v1033 = vld [vmem:[#allocation7 + $0x6c] sm:$0xf]
        %v1034 = vld [vmem:[#allocation7 + $0x70] sm:$0xf]
        %v1035 = vld [vmem:[#allocation7 + $0x74] sm:$0xf]
        %v1036 = vld [vmem:[#allocation7 + $0x78] sm:$0xf]
        %v1037 = vld [vmem:[#allocation7 + $0x7c] sm:$0xf]
        %v1038 = vld [vmem:[#allocation7 + $0x80] sm:$0xf]
        %v1039 = vld [vmem:[#allocation7 + $0x84] sm:$0xf]
        %v1040 = vld [vmem:[#allocation7 + $0x88] sm:$0xf]
        %v1041 = vld [vmem:[#allocation7 + $0x8c] sm:$0xf]
        %v1042 = vld [vmem:[#allocation7 + $0x90] sm:$0xf]
        %v1043 = vld [vmem:[#allocation7 + $0x94] sm:$0xf]
        %v1044 = vld [vmem:[#allocation7 + $0x98] sm:$0xf]
        %v1045 = vld [vmem:[#allocation7 + $0x9c] sm:$0xf]
        %v1046 = vld [vmem:[#allocation7 + $0xa0] sm:$0xf]
        %v1047 = vld [vmem:[#allocation7 + $0xa4] sm:$0xf]
        %v1048 = vld [vmem:[#allocation7 + $0xa8] sm:$0xf]
        %v1049 = vld [vmem:[#allocation7 + $0xac] sm:$0xf]
        %v1050 = vld [vmem:[#allocation7 + $0xb0] sm:$0xf]
        %v1051 = vld [vmem:[#allocation7 + $0xb4] sm:$0xf]
        %v1052 = vld [vmem:[#allocation7 + $0xb8] sm:$0xf]
        %v1053 = vld [vmem:[#allocation7 + $0xbc] sm:$0xf]
        %v1054 = vld [vmem:[#allocation7 + $0xc0] sm:$0xf]
        %v1055 = vld [vmem:[#allocation7 + $0xc4] sm:$0xf]
        %v1056 = vld [vmem:[#allocation7 + $0xc8] sm:$0xf]
        %v1057 = vld [vmem:[#allocation7 + $0xcc] sm:$0xf]
        %v1058 = vld [vmem:[#allocation7 + $0xd0] sm:$0xf]
        %v1059 = vld [vmem:[#allocation7 + $0xd4] sm:$0xf]
        %v1060 = vld [vmem:[#allocation7 + $0xd8] sm:$0xf]
        %v1061 = vld [vmem:[#allocation7 + $0xdc] sm:$0xf]
        %v1062 = vld [vmem:[#allocation7 + $0xe0] sm:$0xf]
        %v1063 = vld [vmem:[#allocation7 + $0xe4] sm:$0xf]
        %v1064 = vld [vmem:[#allocation7 + $0xe8] sm:$0xf]
        %v1065 = vld [vmem:[#allocation7 + $0xec] sm:$0xf]
        %v1066 = vld [vmem:[#allocation7 + $0xf0] sm:$0xf]
        %v1067 = vld [vmem:[#allocation7 + $0xf4] sm:$0xf]
        %v1068 = vld [vmem:[#allocation7 + $0xf8] sm:$0xf]
        %v1069 = vld [vmem:[#allocation7 + $0xfc] sm:$0xf]
        %v1070 = vld [vmem:[#allocation7 + $0x100] sm:$0xf]
        %v1071 = vld [vmem:[#allocation7 + $0x104] sm:$0xf]
        %v1072 = vld [vmem:[#allocation7 + $0x108] sm:$0xf]
        %v1073 = vld [vmem:[#allocation7 + $0x10c] sm:$0xf]
        %v1074 = vld [vmem:[#allocation7 + $0x110] sm:$0xf]
        %v1075 = vld [vmem:[#allocation7 + $0x114] sm:$0xf]
        %v1076 = vld [vmem:[#allocation7 + $0x118] sm:$0xf]
        %v1077 = vld [vmem:[#allocation7 + $0x11c] sm:$0xf]
        %v1078 = vld [vmem:[#allocation7 + $0x120] sm:$0xf]
        %v1079 = vld [vmem:[#allocation7 + $0x124] sm:$0xf]
        %v1080 = vld [vmem:[#allocation7 + $0x128] sm:$0xf]
        %v1081 = vld [vmem:[#allocation7 + $0x12c] sm:$0xf]
        %v1082 = vld [vmem:[#allocation7 + $0x130] sm:$0xf]
        %v1083 = vld [vmem:[#allocation7 + $0x134] sm:$0xf]
        %v1084 = vld [vmem:[#allocation7 + $0x138] sm:$0xf]
        %v1085 = vld [vmem:[#allocation7 + $0x13c] sm:$0xf]
        %v1086 = vld [vmem:[#allocation7 + $0x140] sm:$0xf]
        %v1087 = vld [vmem:[#allocation7 + $0x144] sm:$0xf]
        %v1088 = vld [vmem:[#allocation7 + $0x148] sm:$0xf]
        %v1089 = vld [vmem:[#allocation7 + $0x14c] sm:$0xf]
        %v1090 = vld [vmem:[#allocation7 + $0x150] sm:$0xf]
        %v1091 = vld [vmem:[#allocation7 + $0x154] sm:$0xf]
        %v1092 = vld [vmem:[#allocation7 + $0x158] sm:$0xf]
        %v1093 = vld [vmem:[#allocation7 + $0x15c] sm:$0xf]
        %v1094 = vld [vmem:[#allocation7 + $0x160] sm:$0xf]
        %v1095 = vld [vmem:[#allocation7 + $0x164] sm:$0xf]
        %v1096 = vld [vmem:[#allocation7 + $0x168] sm:$0xf]
        %v1097 = vld [vmem:[#allocation7 + $0x16c] sm:$0xf]
        %v1098 = vld [vmem:[#allocation7 + $0x170] sm:$0xf]
        %v1099 = vld [vmem:[#allocation7 + $0x174] sm:$0xf]
        %v1100 = vld [vmem:[#allocation7 + $0x178] sm:$0xf]
        %v1101 = vld [vmem:[#allocation7 + $0x17c] sm:$0xf]
        %v1102 = vld [vmem:[#allocation7 + $0x180] sm:$0xf]
        %v1103 = vld [vmem:[#allocation7 + $0x184] sm:$0xf]
        %v1104 = vld [vmem:[#allocation7 + $0x188] sm:$0xf]
        %v1105 = vld [vmem:[#allocation7 + $0x18c] sm:$0xf]
        %v1106 = vld [vmem:[#allocation7 + $0x190] sm:$0xf]
        %v1107 = vld [vmem:[#allocation7 + $0x194] sm:$0xf]
        %v1108 = vld [vmem:[#allocation7 + $0x198] sm:$0xf]
        %v1109 = vld [vmem:[#allocation7 + $0x19c] sm:$0xf]
        %v1110 = vld [vmem:[#allocation7 + $0x1a0] sm:$0xf]
        %v1111 = vld [vmem:[#allocation7 + $0x1a4] sm:$0xf]
        %v1112 = vld [vmem:[#allocation7 + $0x1a8] sm:$0xf]
        %v1113 = vld [vmem:[#allocation7 + $0x1ac] sm:$0xf]
        %v1114 = vld [vmem:[#allocation7 + $0x1b0] sm:$0xf]
        %v1115 = vld [vmem:[#allocation7 + $0x1b4] sm:$0xf]
        %v1116 = vld [vmem:[#allocation7 + $0x1b8] sm:$0xf]
        %v1117 = vld [vmem:[#allocation7 + $0x1bc] sm:$0xf]
        %v1118 = vld [vmem:[#allocation7 + $0x1c0] sm:$0xf]
        %v1119 = vld [vmem:[#allocation7 + $0x1c4] sm:$0xf]
        %v1120 = vld [vmem:[#allocation7 + $0x1c8] sm:$0xf]
        %v1121 = vld [vmem:[#allocation7 + $0x1cc] sm:$0xf]
        %v1122 = vld [vmem:[#allocation7 + $0x1d0] sm:$0xf]
        %v1123 = vld [vmem:[#allocation7 + $0x1d4] sm:$0xf]
        %v1124 = vld [vmem:[#allocation7 + $0x1d8] sm:$0xf]
        %v1125 = vld [vmem:[#allocation7 + $0x1dc] sm:$0xf]
        %v1126 = vld [vmem:[#allocation7 + $0x1e0] sm:$0xf]
        %v1127 = vld [vmem:[#allocation7 + $0x1e4] sm:$0xf]
        %v1128 = vld [vmem:[#allocation7 + $0x1e8] sm:$0xf]
        %v1129 = vld [vmem:[#allocation7 + $0x1ec] sm:$0xf]
        %v1130 = vld [vmem:[#allocation7 + $0x1f0] sm:$0xf]
        %v1131 = vld [vmem:[#allocation7 + $0x1f4] sm:$0xf]
        %v1132 = vld [vmem:[#allocation7 + $0x1f8] sm:$0xf]
        %v1133 = vld [vmem:[#allocation7 + $0x1fc] sm:$0xf]
        %v1134 = vld [vmem:[#allocation7 + $0x200] sm:$0xf]
        %v1135 = vld [vmem:[#allocation7 + $0x204] sm:$0xf]
        %v1136 = vld [vmem:[#allocation7 + $0x208] sm:$0xf]
        %v1137 = vld [vmem:[#allocation7 + $0x20c] sm:$0xf]
        %v1138 = vld [vmem:[#allocation7 + $0x210] sm:$0xf]
        %v1139 = vld [vmem:[#allocation7 + $0x214] sm:$0xf]
        %v1140 = vld [vmem:[#allocation7 + $0x218] sm:$0xf]
        %v1141 = vld [vmem:[#allocation7 + $0x21c] sm:$0xf]
        %v1142 = vld [vmem:[#allocation7 + $0x220] sm:$0xf]
        %v1143 = vld [vmem:[#allocation7 + $0x224] sm:$0xf]
        %v1144 = vld [vmem:[#allocation7 + $0x228] sm:$0xf]
        %v1145 = vld [vmem:[#allocation7 + $0x22c] sm:$0xf]
        %v1146 = vld [vmem:[#allocation7 + $0x230] sm:$0xf]
        %v1147 = vld [vmem:[#allocation7 + $0x234] sm:$0xf]
        %v1148 = vld [vmem:[#allocation7 + $0x238] sm:$0xf]
        %v1149 = vld [vmem:[#allocation7 + $0x23c] sm:$0xf]
        %v1150 = vpack.c.b16 %v958, %v957
        %v1151 = vpack.c.b16 %v959, %v957
        %v1152 = vpack.c.b16 %v960, %v957
        %v1153 = vpack.c.b16 %v961, %v958
        %v1154 = vpack.c.b16 %v962, %v959
        %v1155 = vpack.c.b16 %v963, %v960
        %v1156 = vpack.c.b16 %v964, %v961
        %v1157 = vpack.c.b16 %v965, %v962
        %v1158 = vpack.c.b16 %v966, %v963
        %v1159 = vpack.c.b16 %v967, %v964
        %v1160 = vpack.c.b16 %v968, %v965
        %v1161 = vpack.c.b16 %v969, %v966
        %v1162 = vpack.c.b16 %v970, %v967
        %v1163 = vpack.c.b16 %v971, %v968
        %v1164 = vpack.c.b16 %v972, %v969
        %v1165 = vpack.c.b16 %v973, %v970
        %v1166 = vpack.c.b16 %v974, %v971
        %v1167 = vpack.c.b16 %v975, %v972
        %v1168 = vpack.c.b16 %v976, %v973
        %v1169 = vpack.c.b16 %v977, %v974
        %v1170 = vpack.c.b16 %v978, %v975
        %v1171 = vpack.c.b16 %v979, %v976
        %v1172 = vpack.c.b16 %v980, %v977
        %v1173 = vpack.c.b16 %v981, %v978
        %v1174 = vpack.c.b16 %v957, %v979
        %v1175 = vpack.c.b16 %v957, %v980
        %v1176 = vpack.c.b16 %v957, %v981
        %v1177 = vpack.c.b16 %v982, %v957
        %v1178 = vpack.c.b16 %v983, %v957
        %v1179 = vpack.c.b16 %v984, %v957
        %v1180 = vpack.c.b16 %v985, %v982
        %v1181 = vpack.c.b16 %v986, %v983
        %v1182 = vpack.c.b16 %v987, %v984
        %v1183 = vpack.c.b16 %v988, %v985
        %v1184 = vpack.c.b16 %v989, %v986
        %v1185 = vpack.c.b16 %v990, %v987
        %v1186 = vpack.c.b16 %v991, %v988
        %v1187 = vpack.c.b16 %v992, %v989
        %v1188 = vpack.c.b16 %v993, %v990
        %v1189 = vpack.c.b16 %v994, %v991
        %v1190 = vpack.c.b16 %v995, %v992
        %v1191 = vpack.c.b16 %v996, %v993
        %v1192 = vpack.c.b16 %v997, %v994
        %v1193 = vpack.c.b16 %v998, %v995
        %v1194 = vpack.c.b16 %v999, %v996
        %v1195 = vpack.c.b16 %v1000, %v997
        %v1196 = vpack.c.b16 %v1001, %v998
        %v1197 = vpack.c.b16 %v1002, %v999
        %v1198 = vpack.c.b16 %v1003, %v1000
        %v1199 = vpack.c.b16 %v1004, %v1001
        %v1200 = vpack.c.b16 %v1005, %v1002
        %v1201 = vpack.c.b16 %v957, %v1003
        %v1202 = vpack.c.b16 %v957, %v1004
        %v1203 = vpack.c.b16 %v957, %v1005
        %v1402 = vunpack.c.l.b16 %v1006
        %v1403 = vunpack.c.l.b16 %v1007
        %v1404 = vunpack.c.l.b16 %v1008
        %v1405 = vunpack.c.l.b16 %v1009
        %v1406 = vunpack.c.l.b16 %v1010
        %v1407 = vunpack.c.l.b16 %v1011
        %v1408 = vunpack.c.l.b16 %v1012
        %v1409 = vunpack.c.l.b16 %v1013
        %v1410 = vunpack.c.l.b16 %v1014
        %v1411 = vunpack.c.l.b16 %v1015
        %v1412 = vunpack.c.l.b16 %v1016
        %v1413 = vunpack.c.l.b16 %v1017
        %v1414 = vunpack.c.l.b16 %v1018
        %v1415 = vunpack.c.l.b16 %v1019
        %v1416 = vunpack.c.l.b16 %v1020
        %v1417 = vunpack.c.l.b16 %v1021
        %v1418 = vunpack.c.l.b16 %v1022
        %v1419 = vunpack.c.l.b16 %v1023
        %v1420 = vunpack.c.l.b16 %v1024
        %v1421 = vunpack.c.l.b16 %v1025
        %v1422 = vunpack.c.l.b16 %v1026
        %v1423 = vunpack.c.l.b16 %v1027
        %v1424 = vunpack.c.l.b16 %v1028
        %v1425 = vunpack.c.l.b16 %v1029
        %v1426 = vunpack.c.l.b16 %v1030
        %v1427 = vunpack.c.l.b16 %v1031
        %v1428 = vunpack.c.l.b16 %v1032
        %v1429 = vunpack.c.l.b16 %v1033
        %v1430 = vunpack.c.l.b16 %v1034
        %v1431 = vunpack.c.l.b16 %v1035
        %v1432 = vunpack.c.l.b16 %v1036
        %v1433 = vunpack.c.l.b16 %v1037
        %v1434 = vunpack.c.l.b16 %v1038
        %v1435 = vunpack.c.l.b16 %v1039
        %v1436 = vunpack.c.l.b16 %v1040
        %v1437 = vunpack.c.l.b16 %v1041
        %v1438 = vunpack.c.l.b16 %v1042
        %v1439 = vunpack.c.l.b16 %v1043
        %v1440 = vunpack.c.l.b16 %v1044
        %v1441 = vunpack.c.l.b16 %v1045
        %v1442 = vunpack.c.l.b16 %v1046
        %v1443 = vunpack.c.l.b16 %v1047
        %v1444 = vunpack.c.l.b16 %v1048
        %v1445 = vunpack.c.l.b16 %v1049
        %v1446 = vunpack.c.l.b16 %v1050
        %v1447 = vunpack.c.l.b16 %v1051
        %v1448 = vunpack.c.l.b16 %v1052
        %v1449 = vunpack.c.l.b16 %v1053
        %v1450 = vunpack.c.l.b16 %v1054
        %v1451 = vunpack.c.l.b16 %v1055
        %v1452 = vunpack.c.l.b16 %v1056
        %v1453 = vunpack.c.l.b16 %v1057
        %v1454 = vunpack.c.l.b16 %v1058
        %v1455 = vunpack.c.l.b16 %v1059
        %v1456 = vunpack.c.l.b16 %v1060
        %v1457 = vunpack.c.l.b16 %v1061
        %v1458 = vunpack.c.l.b16 %v1062
        %v1459 = vunpack.c.l.b16 %v1063
        %v1460 = vunpack.c.l.b16 %v1064
        %v1461 = vunpack.c.l.b16 %v1065
        %v1462 = vunpack.c.l.b16 %v1066
        %v1463 = vunpack.c.l.b16 %v1067
        %v1464 = vunpack.c.l.b16 %v1068
        %v1465 = vunpack.c.l.b16 %v1069
        %v1466 = vunpack.c.l.b16 %v1070
        %v1467 = vunpack.c.l.b16 %v1071
        %v1468 = vunpack.c.l.b16 %v1072
        %v1469 = vunpack.c.l.b16 %v1073
        %v1470 = vunpack.c.l.b16 %v1074
        %v1471 = vunpack.c.l.b16 %v1075
        %v1472 = vunpack.c.l.b16 %v1076
        %v1473 = vunpack.c.l.b16 %v1077
        %v1474 = vunpack.c.l.b16 %v1078
        %v1475 = vunpack.c.l.b16 %v1079
        %v1476 = vunpack.c.l.b16 %v1080
        %v1477 = vunpack.c.l.b16 %v1081
        %v1478 = vunpack.c.l.b16 %v1082
        %v1479 = vunpack.c.l.b16 %v1083
        %v1480 = vunpack.c.l.b16 %v1084
        %v1481 = vunpack.c.l.b16 %v1085
        %v1482 = vunpack.c.l.b16 %v1086
        %v1483 = vunpack.c.l.b16 %v1087
        %v1484 = vunpack.c.l.b16 %v1088
        %v1485 = vunpack.c.l.b16 %v1089
        %v1486 = vunpack.c.l.b16 %v1090
        %v1487 = vunpack.c.l.b16 %v1091
        %v1488 = vunpack.c.l.b16 %v1092
        %v1489 = vunpack.c.l.b16 %v1093
        %v1490 = vunpack.c.l.b16 %v1094
        %v1491 = vunpack.c.l.b16 %v1095
        %v1492 = vunpack.c.l.b16 %v1096
        %v1493 = vunpack.c.l.b16 %v1097
        %v1494 = vunpack.c.l.b16 %v1098
        %v1495 = vunpack.c.l.b16 %v1099
        %v1496 = vunpack.c.l.b16 %v1100
        %v1497 = vunpack.c.l.b16 %v1101
        %v1498 = vunpack.c.l.b16 %v1102
        %v1499 = vunpack.c.l.b16 %v1103
        %v1500 = vunpack.c.l.b16 %v1104
        %v1501 = vunpack.c.l.b16 %v1105
        %v1502 = vunpack.c.l.b16 %v1106
        %v1503 = vunpack.c.l.b16 %v1107
        %v1504 = vunpack.c.l.b16 %v1108
        %v1505 = vunpack.c.l.b16 %v1109
        %v1506 = vunpack.c.l.b16 %v1110
        %v1507 = vunpack.c.l.b16 %v1111
        %v1508 = vunpack.c.l.b16 %v1112
        %v1509 = vunpack.c.l.b16 %v1113
        %v1510 = vunpack.c.l.b16 %v1114
        %v1511 = vunpack.c.l.b16 %v1115
        %v1512 = vunpack.c.l.b16 %v1116
        %v1513 = vunpack.c.l.b16 %v1117
        %v1514 = vunpack.c.l.b16 %v1118
        %v1515 = vunpack.c.l.b16 %v1119
        %v1516 = vunpack.c.l.b16 %v1120
        %v1517 = vunpack.c.l.b16 %v1121
        %v1518 = vunpack.c.l.b16 %v1122
        %v1519 = vunpack.c.l.b16 %v1123
        %v1520 = vunpack.c.l.b16 %v1124
        %v1521 = vunpack.c.l.b16 %v1125
        %v1522 = vunpack.c.l.b16 %v1126
        %v1523 = vunpack.c.l.b16 %v1127
        %v1524 = vunpack.c.l.b16 %v1128
        %v1525 = vunpack.c.l.b16 %v1129
        %v1526 = vunpack.c.l.b16 %v1130
        %v1527 = vunpack.c.l.b16 %v1131
        %v1528 = vunpack.c.l.b16 %v1132
        %v1529 = vunpack.c.l.b16 %v1133
        %v1530 = vunpack.c.l.b16 %v1134
        %v1531 = vunpack.c.l.b16 %v1135
        %v1532 = vunpack.c.l.b16 %v1136
        %v1533 = vunpack.c.l.b16 %v1137
        %v1534 = vunpack.c.l.b16 %v1138
        %v1535 = vunpack.c.l.b16 %v1139
        %v1536 = vunpack.c.l.b16 %v1140
        %v1537 = vunpack.c.l.b16 %v1141
        %v1538 = vunpack.c.l.b16 %v1142
        %v1539 = vunpack.c.l.b16 %v1143
        %v1540 = vunpack.c.l.b16 %v1144
        %v1541 = vunpack.c.l.b16 %v1145
        %v1542 = vunpack.c.l.b16 %v1146
        %v1543 = vunpack.c.l.b16 %v1147
        %v1544 = vunpack.c.l.b16 %v1148
        %v1545 = vunpack.c.l.b16 %v1149
        %v1546 = vpack.c.b16 %v1403, %v1402
        %v1547 = vpack.c.b16 %v1405, %v1404
        %v1548 = vpack.c.b16 %v1407, %v1406
        %v1549 = vpack.c.b16 %v1409, %v1408
        %v1550 = vpack.c.b16 %v1411, %v1410
        %v1551 = vpack.c.b16 %v1413, %v1412
        %v1552 = vpack.c.b16 %v1415, %v1414
        %v1553 = vpack.c.b16 %v1417, %v1416
        %v1554 = vpack.c.b16 %v1419, %v1418
        %v1555 = vpack.c.b16 %v1421, %v1420
        %v1556 = vpack.c.b16 %v1423, %v1422
        %v1557 = vpack.c.b16 %v1425, %v1424
        %v1558 = vpack.c.b16 %v1427, %v1426
        %v1559 = vpack.c.b16 %v1429, %v1428
        %v1560 = vpack.c.b16 %v1431, %v1430
        %v1561 = vpack.c.b16 %v1433, %v1432
        %v1562 = vpack.c.b16 %v1435, %v1434
        %v1563 = vpack.c.b16 %v1437, %v1436
        %v1564 = vpack.c.b16 %v1439, %v1438
        %v1565 = vpack.c.b16 %v1441, %v1440
        %v1566 = vpack.c.b16 %v1443, %v1442
        %v1567 = vpack.c.b16 %v1445, %v1444
        %v1568 = vpack.c.b16 %v1447, %v1446
        %v1569 = vpack.c.b16 %v1449, %v1448
        %v1570 = vpack.c.b16 %v1451, %v1450
        %v1571 = vpack.c.b16 %v1453, %v1452
        %v1572 = vpack.c.b16 %v1455, %v1454
        %v1573 = vpack.c.b16 %v1457, %v1456
        %v1574 = vpack.c.b16 %v1459, %v1458
        %v1575 = vpack.c.b16 %v1461, %v1460
        %v1576 = vpack.c.b16 %v1463, %v1462
        %v1577 = vpack.c.b16 %v1465, %v1464
        %v1578 = vpack.c.b16 %v1467, %v1466
        %v1579 = vpack.c.b16 %v1469, %v1468
        %v1580 = vpack.c.b16 %v1471, %v1470
        %v1581 = vpack.c.b16 %v1473, %v1472
        %v1582 = vpack.c.b16 %v1475, %v1474
        %v1583 = vpack.c.b16 %v1477, %v1476
        %v1584 = vpack.c.b16 %v1479, %v1478
        %v1585 = vpack.c.b16 %v1481, %v1480
        %v1586 = vpack.c.b16 %v1483, %v1482
        %v1587 = vpack.c.b16 %v1485, %v1484
        %v1588 = vpack.c.b16 %v1487, %v1486
        %v1589 = vpack.c.b16 %v1489, %v1488
        %v1590 = vpack.c.b16 %v1491, %v1490
        %v1591 = vpack.c.b16 %v1493, %v1492
        %v1592 = vpack.c.b16 %v1495, %v1494
        %v1593 = vpack.c.b16 %v1497, %v1496
        %v1594 = vpack.c.b16 %v1499, %v1498
        %v1595 = vpack.c.b16 %v1501, %v1500
        %v1596 = vpack.c.b16 %v1503, %v1502
        %v1597 = vpack.c.b16 %v1505, %v1504
        %v1598 = vpack.c.b16 %v1507, %v1506
        %v1599 = vpack.c.b16 %v1509, %v1508
        %v1600 = vpack.c.b16 %v1511, %v1510
        %v1601 = vpack.c.b16 %v1513, %v1512
        %v1602 = vpack.c.b16 %v1515, %v1514
        %v1603 = vpack.c.b16 %v1517, %v1516
        %v1604 = vpack.c.b16 %v1519, %v1518
        %v1605 = vpack.c.b16 %v1521, %v1520
        %v1606 = vpack.c.b16 %v1523, %v1522
        %v1607 = vpack.c.b16 %v1525, %v1524
        %v1608 = vpack.c.b16 %v1527, %v1526
        %v1609 = vpack.c.b16 %v1529, %v1528
        %v1610 = vpack.c.b16 %v1531, %v1530
        %v1611 = vpack.c.b16 %v1533, %v1532
        %v1612 = vpack.c.b16 %v1535, %v1534
        %v1613 = vpack.c.b16 %v1537, %v1536
        %v1614 = vpack.c.b16 %v1539, %v1538
        %v1615 = vpack.c.b16 %v1541, %v1540
        %v1616 = vpack.c.b16 %v1543, %v1542
        %v1617 = vpack.c.b16 %v1545, %v1544
        %1690 = vmatprep.subr.bf16.mxu0 0
        %1691 = vmatpush1.bf16.msra.mxu0 %v1553
        %1692 = vmatprep.subr.bf16.mxu0 0
        %1693 = vmatpush1.bf16.msra.mxu0 %v1552
        %1694 = vmatprep.subr.bf16.mxu0 0
        %1695 = vmatpush1.bf16.msra.mxu0 %v1551
        %1696 = vmatprep.subr.bf16.mxu0 0
        %1697 = vmatpush1.bf16.msra.mxu0 %v1550
        %1698 = vmatprep.subr.bf16.mxu0 0
        %1699 = vmatpush1.bf16.msra.mxu0 %v1549
        %1700 = vmatprep.subr.bf16.mxu0 0
        %1701 = vmatpush1.bf16.msra.mxu0 %v1548
        %1702 = vmatprep.subr.bf16.mxu0 0
        %1703 = vmatpush1.bf16.msra.mxu0 %v1547
        %1704 = vmatprep.subr.bf16.mxu0 0
        %1705 = vmatpush1.bf16.msra.mxu0 %v1546
        %1706 = vmatprep.subr.bf16.mxu0 0
        %1707 = vmatpush2.bf16.msra.mxu0 %v1561
        %1708 = vmatprep.subr.bf16.mxu0 0
        %1709 = vmatpush2.bf16.msra.mxu0 %v1560
        %1710 = vmatprep.subr.bf16.mxu0 0
        %1711 = vmatpush2.bf16.msra.mxu0 %v1559
        %1712 = vmatprep.subr.bf16.mxu0 0
        %1713 = vmatpush2.bf16.msra.mxu0 %v1558
        %1714 = vmatprep.subr.bf16.mxu0 0
        %1715 = vmatpush2.bf16.msra.mxu0 %v1557
        %1716 = vmatprep.subr.bf16.mxu0 0
        %1717 = vmatpush2.bf16.msra.mxu0 %v1556
        %1718 = vmatprep.subr.bf16.mxu0 0
        %1719 = vmatpush2.bf16.msra.mxu0 %v1555
        %1720 = vmatprep.subr.bf16.mxu0 0
        %1721 = vmatpush2.bf16.msra.mxu0 %v1554
        %1722 = vmatprep.mubr.bf16.mxu0 %v1151
        %1723 = vmatmul.mubr.bf16.gmra.mxu0 %v1150
        %v1724 = vpop.f32.mrf.mxu0
        %v1725 = vadd.f32 0.0, %v1724
        %v1726 = vpop.f32.mrf.mxu0
        %v1727 = vpop.f32.mrf.mxu0
        %v1728 = vadd.f32 0.0, %v1727
        %v1729 = vpop.f32.mrf.mxu0
        %1730 = vmatprep.mubr.bf16.mxu0 %v1157
        %1731 = vmatmul.mubr.bf16.gmra.mxu0 %v1156
        %v1732 = vpop.f32.mrf.mxu0
        %v1733 = vadd.f32 0.0, %v1732
        %v1734 = vpop.f32.mrf.mxu0
        %v1735 = vpop.f32.mrf.mxu0
        %v1736 = vadd.f32 0.0, %v1735
        %v1737 = vpop.f32.mrf.mxu0
        %1738 = vmatprep.mubr.bf16.mxu0 %v1163
        %1739 = vmatmul.mubr.bf16.gmra.mxu0 %v1162
        %v1740 = vpop.f32.mrf.mxu0
        %v1741 = vadd.f32 0.0, %v1740
        %v1742 = vpop.f32.mrf.mxu0
        %v1743 = vpop.f32.mrf.mxu0
        %v1744 = vadd.f32 0.0, %v1743
        %v1745 = vpop.f32.mrf.mxu0
        %1746 = vmatprep.mubr.bf16.mxu0 %v1169
        %1747 = vmatmul.mubr.bf16.gmra.mxu0 %v1168
        %v1748 = vpop.f32.mrf.mxu0
        %v1749 = vadd.f32 0.0, %v1748
        %v1750 = vpop.f32.mrf.mxu0
        %v1751 = vpop.f32.mrf.mxu0
        %v1752 = vadd.f32 0.0, %v1751
        %v1753 = vpop.f32.mrf.mxu0
        %1754 = vmatprep.mubr.bf16.mxu0 %v1178
        %1755 = vmatmul.mubr.bf16.gmra.mxu0 %v1177
        %v1756 = vpop.f32.mrf.mxu0
        %v1757 = vadd.f32 0.0, %v1756
        %v1758 = vpop.f32.mrf.mxu0
        %v1759 = vpop.f32.mrf.mxu0
        %v1760 = vadd.f32 0.0, %v1759
        %v1761 = vpop.f32.mrf.mxu0
        %1762 = vmatprep.mubr.bf16.mxu0 %v1184
        %1763 = vmatmul.mubr.bf16.gmra.mxu0 %v1183
        %v1764 = vpop.f32.mrf.mxu0
        %v1765 = vadd.f32 0.0, %v1764
        %v1766 = vpop.f32.mrf.mxu0
        %v1767 = vpop.f32.mrf.mxu0
        %v1768 = vadd.f32 0.0, %v1767
        %v1769 = vpop.f32.mrf.mxu0
        %1770 = vmatprep.mubr.bf16.mxu0 %v1190
        %1771 = vmatmul.mubr.bf16.gmra.mxu0 %v1189
        %v1772 = vpop.f32.mrf.mxu0
        %v1773 = vadd.f32 0.0, %v1772
        %v1774 = vpop.f32.mrf.mxu0
        %v1775 = vpop.f32.mrf.mxu0
        %v1776 = vadd.f32 0.0, %v1775
        %v1777 = vpop.f32.mrf.mxu0
        %1778 = vmatprep.mubr.bf16.mxu0 %v1196
        %1779 = vmatmul.mubr.bf16.gmra.mxu0 %v1195
        %v1780 = vpop.f32.mrf.mxu0
        %v1781 = vadd.f32 0.0, %v1780
        %v1782 = vpop.f32.mrf.mxu0
        %v1783 = vpop.f32.mrf.mxu0
        %v1784 = vadd.f32 0.0, %v1783
        %v1785 = vpop.f32.mrf.mxu0
        %1786 = vdwg.mxu0
        %1787 = vmatprep.subr.bf16.mxu0 0
        %1788 = vmatpush1.bf16.msra.mxu0 %v1569
        %1789 = vmatprep.subr.bf16.mxu0 0
        %1790 = vmatpush1.bf16.msra.mxu0 %v1568
        %1791 = vmatprep.subr.bf16.mxu0 0
        %1792 = vmatpush1.bf16.msra.mxu0 %v1567
        %1793 = vmatprep.subr.bf16.mxu0 0
        %1794 = vmatpush1.bf16.msra.mxu0 %v1566
        %1795 = vmatprep.subr.bf16.mxu0 0
        %1796 = vmatpush1.bf16.msra.mxu0 %v1565
        %1797 = vmatprep.subr.bf16.mxu0 0
        %1798 = vmatpush1.bf16.msra.mxu0 %v1564
        %1799 = vmatprep.subr.bf16.mxu0 0
        %1800 = vmatpush1.bf16.msra.mxu0 %v1563
        %1801 = vmatprep.subr.bf16.mxu0 0
        %1802 = vmatpush1.bf16.msra.mxu0 %v1562
        %1803 = vmatprep.subr.bf16.mxu0 0
        %1804 = vmatpush2.bf16.msra.mxu0 %v1577
        %1805 = vmatprep.subr.bf16.mxu0 0
        %1806 = vmatpush2.bf16.msra.mxu0 %v1576
        %1807 = vmatprep.subr.bf16.mxu0 0
        %1808 = vmatpush2.bf16.msra.mxu0 %v1575
        %1809 = vmatprep.subr.bf16.mxu0 0
        %1810 = vmatpush2.bf16.msra.mxu0 %v1574
        %1811 = vmatprep.subr.bf16.mxu0 0
        %1812 = vmatpush2.bf16.msra.mxu0 %v1573
        %1813 = vmatprep.subr.bf16.mxu0 0
        %1814 = vmatpush2.bf16.msra.mxu0 %v1572
        %1815 = vmatprep.subr.bf16.mxu0 0
        %1816 = vmatpush2.bf16.msra.mxu0 %v1571
        %1817 = vmatprep.subr.bf16.mxu0 0
        %1818 = vmatpush2.bf16.msra.mxu0 %v1570
        %1819 = vmatprep.mubr.bf16.mxu0 %v1153
        %1820 = vmatmul.mubr.bf16.gmra.mxu0 %v1152
        %v1821 = vpop.f32.mrf.mxu0
        %v1822 = vadd.f32 %v1725, %v1821
        %v1823 = vpop.f32.mrf.mxu0
        %v1824 = vpop.f32.mrf.mxu0
        %v1825 = vadd.f32 %v1728, %v1824
        %v1826 = vpop.f32.mrf.mxu0
        %1827 = vmatprep.mubr.bf16.mxu0 %v1159
        %1828 = vmatmul.mubr.bf16.gmra.mxu0 %v1158
        %v1829 = vpop.f32.mrf.mxu0
        %v1830 = vadd.f32 %v1733, %v1829
        %v1831 = vpop.f32.mrf.mxu0
        %v1832 = vpop.f32.mrf.mxu0
        %v1833 = vadd.f32 %v1736, %v1832
        %v1834 = vpop.f32.mrf.mxu0
        %1835 = vmatprep.mubr.bf16.mxu0 %v1165
        %1836 = vmatmul.mubr.bf16.gmra.mxu0 %v1164
        %v1837 = vpop.f32.mrf.mxu0
        %v1838 = vadd.f32 %v1741, %v1837
        %v1839 = vpop.f32.mrf.mxu0
        %v1840 = vpop.f32.mrf.mxu0
        %v1841 = vadd.f32 %v1744, %v1840
        %v1842 = vpop.f32.mrf.mxu0
        %1843 = vmatprep.mubr.bf16.mxu0 %v1171
        %1844 = vmatmul.mubr.bf16.gmra.mxu0 %v1170
        %v1845 = vpop.f32.mrf.mxu0
        %v1846 = vadd.f32 %v1749, %v1845
        %v1847 = vpop.f32.mrf.mxu0
        %v1848 = vpop.f32.mrf.mxu0
        %v1849 = vadd.f32 %v1752, %v1848
        %v1850 = vpop.f32.mrf.mxu0
        %1851 = vmatprep.mubr.bf16.mxu0 %v1180
        %1852 = vmatmul.mubr.bf16.gmra.mxu0 %v1179
        %v1853 = vpop.f32.mrf.mxu0
        %v1854 = vadd.f32 %v1757, %v1853
        %v1855 = vpop.f32.mrf.mxu0
        %v1856 = vpop.f32.mrf.mxu0
        %v1857 = vadd.f32 %v1760, %v1856
        %v1858 = vpop.f32.mrf.mxu0
        %1859 = vmatprep.mubr.bf16.mxu0 %v1186
        %1860 = vmatmul.mubr.bf16.gmra.mxu0 %v1185
        %v1861 = vpop.f32.mrf.mxu0
        %v1862 = vadd.f32 %v1765, %v1861
        %v1863 = vpop.f32.mrf.mxu0
        %v1864 = vpop.f32.mrf.mxu0
        %v1865 = vadd.f32 %v1768, %v1864
        %v1866 = vpop.f32.mrf.mxu0
        %1867 = vmatprep.mubr.bf16.mxu0 %v1192
        %1868 = vmatmul.mubr.bf16.gmra.mxu0 %v1191
        %v1869 = vpop.f32.mrf.mxu0
        %v1870 = vadd.f32 %v1773, %v1869
        %v1871 = vpop.f32.mrf.mxu0
        %v1872 = vpop.f32.mrf.mxu0
        %v1873 = vadd.f32 %v1776, %v1872
        %v1874 = vpop.f32.mrf.mxu0
        %1875 = vmatprep.mubr.bf16.mxu0 %v1198
        %1876 = vmatmul.mubr.bf16.gmra.mxu0 %v1197
        %v1877 = vpop.f32.mrf.mxu0
        %v1878 = vadd.f32 %v1781, %v1877
        %v1879 = vpop.f32.mrf.mxu0
        %v1880 = vpop.f32.mrf.mxu0
        %v1881 = vadd.f32 %v1784, %v1880
        %v1882 = vpop.f32.mrf.mxu0
        %1883 = vdwg.mxu0
        %1884 = vmatprep.subr.bf16.mxu0 0
        %1885 = vmatpush1.bf16.msra.mxu0 %v1585
        %1886 = vmatprep.subr.bf16.mxu0 0
        %1887 = vmatpush1.bf16.msra.mxu0 %v1584
        %1888 = vmatprep.subr.bf16.mxu0 0
        %1889 = vmatpush1.bf16.msra.mxu0 %v1583
        %1890 = vmatprep.subr.bf16.mxu0 0
        %1891 = vmatpush1.bf16.msra.mxu0 %v1582
        %1892 = vmatprep.subr.bf16.mxu0 0
        %1893 = vmatpush1.bf16.msra.mxu0 %v1581
        %1894 = vmatprep.subr.bf16.mxu0 0
        %1895 = vmatpush1.bf16.msra.mxu0 %v1580
        %1896 = vmatprep.subr.bf16.mxu0 0
        %1897 = vmatpush1.bf16.msra.mxu0 %v1579
        %1898 = vmatprep.subr.bf16.mxu0 0
        %1899 = vmatpush1.bf16.msra.mxu0 %v1578
        %1900 = vmatprep.subr.bf16.mxu0 0
        %1901 = vmatpush2.bf16.msra.mxu0 %v1593
        %1902 = vmatprep.subr.bf16.mxu0 0
        %1903 = vmatpush2.bf16.msra.mxu0 %v1592
        %1904 = vmatprep.subr.bf16.mxu0 0
        %1905 = vmatpush2.bf16.msra.mxu0 %v1591
        %1906 = vmatprep.subr.bf16.mxu0 0
        %1907 = vmatpush2.bf16.msra.mxu0 %v1590
        %1908 = vmatprep.subr.bf16.mxu0 0
        %1909 = vmatpush2.bf16.msra.mxu0 %v1589
        %1910 = vmatprep.subr.bf16.mxu0 0
        %1911 = vmatpush2.bf16.msra.mxu0 %v1588
        %1912 = vmatprep.subr.bf16.mxu0 0
        %1913 = vmatpush2.bf16.msra.mxu0 %v1587
        %1914 = vmatprep.subr.bf16.mxu0 0
        %1915 = vmatpush2.bf16.msra.mxu0 %v1586
        %1916 = vmatprep.mubr.bf16.mxu0 %v1155
        %1917 = vmatmul.mubr.bf16.gmra.mxu0 %v1154
        %v1918 = vpop.f32.mrf.mxu0
        %v1919 = vadd.f32 %v1822, %v1918
        %v1920 = vpop.f32.mrf.mxu0
        %v1921 = vpop.f32.mrf.mxu0
        %v1922 = vadd.f32 %v1825, %v1921
        %v1923 = vpop.f32.mrf.mxu0
        %1924 = vmatprep.mubr.bf16.mxu0 %v1161
        %1925 = vmatmul.mubr.bf16.gmra.mxu0 %v1160
        %v1926 = vpop.f32.mrf.mxu0
        %v1927 = vadd.f32 %v1830, %v1926
        %v1928 = vpop.f32.mrf.mxu0
        %v1929 = vpop.f32.mrf.mxu0
        %v1930 = vadd.f32 %v1833, %v1929
        %v1931 = vpop.f32.mrf.mxu0
        %1932 = vmatprep.mubr.bf16.mxu0 %v1167
        %1933 = vmatmul.mubr.bf16.gmra.mxu0 %v1166
        %v1934 = vpop.f32.mrf.mxu0
        %v1935 = vadd.f32 %v1838, %v1934
        %v1936 = vpop.f32.mrf.mxu0
        %v1937 = vpop.f32.mrf.mxu0
        %v1938 = vadd.f32 %v1841, %v1937
        %v1939 = vpop.f32.mrf.mxu0
        %1940 = vmatprep.mubr.bf16.mxu0 %v1173
        %1941 = vmatmul.mubr.bf16.gmra.mxu0 %v1172
        %v1942 = vpop.f32.mrf.mxu0
        %v1943 = vadd.f32 %v1846, %v1942
        %v1944 = vpop.f32.mrf.mxu0
        %v1945 = vpop.f32.mrf.mxu0
        %v1946 = vadd.f32 %v1849, %v1945
        %v1947 = vpop.f32.mrf.mxu0
        %1948 = vmatprep.mubr.bf16.mxu0 %v1182
        %1949 = vmatmul.mubr.bf16.gmra.mxu0 %v1181
        %v1950 = vpop.f32.mrf.mxu0
        %v1951 = vadd.f32 %v1854, %v1950
        %v1952 = vpop.f32.mrf.mxu0
        %v1953 = vpop.f32.mrf.mxu0
        %v1954 = vadd.f32 %v1857, %v1953
        %v1955 = vpop.f32.mrf.mxu0
        %1956 = vmatprep.mubr.bf16.mxu0 %v1188
        %1957 = vmatmul.mubr.bf16.gmra.mxu0 %v1187
        %v1958 = vpop.f32.mrf.mxu0
        %v1959 = vadd.f32 %v1862, %v1958
        %v1960 = vpop.f32.mrf.mxu0
        %v1961 = vpop.f32.mrf.mxu0
        %v1962 = vadd.f32 %v1865, %v1961
        %v1963 = vpop.f32.mrf.mxu0
        %1964 = vmatprep.mubr.bf16.mxu0 %v1194
        %1965 = vmatmul.mubr.bf16.gmra.mxu0 %v1193
        %v1966 = vpop.f32.mrf.mxu0
        %v1967 = vadd.f32 %v1870, %v1966
        %v1968 = vpop.f32.mrf.mxu0
        %v1969 = vpop.f32.mrf.mxu0
        %v1970 = vadd.f32 %v1873, %v1969
        %v1971 = vpop.f32.mrf.mxu0
        %1972 = vmatprep.mubr.bf16.mxu0 %v1200
        %1973 = vmatmul.mubr.bf16.gmra.mxu0 %v1199
        %v1974 = vpop.f32.mrf.mxu0
        %v1975 = vadd.f32 %v1878, %v1974
        %v1976 = vpop.f32.mrf.mxu0
        %v1977 = vpop.f32.mrf.mxu0
        %v1978 = vadd.f32 %v1881, %v1977
        %v1979 = vpop.f32.mrf.mxu0
        %1980 = vdwg.mxu0
        %1981 = vmatprep.subr.bf16.mxu0 0
        %1982 = vmatpush1.bf16.msra.mxu0 %v1601
        %1983 = vmatprep.subr.bf16.mxu0 0
        %1984 = vmatpush1.bf16.msra.mxu0 %v1600
        %1985 = vmatprep.subr.bf16.mxu0 0
        %1986 = vmatpush1.bf16.msra.mxu0 %v1599
        %1987 = vmatprep.subr.bf16.mxu0 0
        %1988 = vmatpush1.bf16.msra.mxu0 %v1598
        %1989 = vmatprep.subr.bf16.mxu0 0
        %1990 = vmatpush1.bf16.msra.mxu0 %v1597
        %1991 = vmatprep.subr.bf16.mxu0 0
        %1992 = vmatpush1.bf16.msra.mxu0 %v1596
        %1993 = vmatprep.subr.bf16.mxu0 0
        %1994 = vmatpush1.bf16.msra.mxu0 %v1595
        %1995 = vmatprep.subr.bf16.mxu0 0
        %1996 = vmatpush1.bf16.msra.mxu0 %v1594
        %1997 = vmatprep.subr.bf16.mxu0 0
        %1998 = vmatpush2.bf16.msra.mxu0 %v1609
        %1999 = vmatprep.subr.bf16.mxu0 0
        %2000 = vmatpush2.bf16.msra.mxu0 %v1608
        %2001 = vmatprep.subr.bf16.mxu0 0
        %2002 = vmatpush2.bf16.msra.mxu0 %v1607
        %2003 = vmatprep.subr.bf16.mxu0 0
        %2004 = vmatpush2.bf16.msra.mxu0 %v1606
        %2005 = vmatprep.subr.bf16.mxu0 0
        %2006 = vmatpush2.bf16.msra.mxu0 %v1605
        %2007 = vmatprep.subr.bf16.mxu0 0
        %2008 = vmatpush2.bf16.msra.mxu0 %v1604
        %2009 = vmatprep.subr.bf16.mxu0 0
        %2010 = vmatpush2.bf16.msra.mxu0 %v1603
        %2011 = vmatprep.subr.bf16.mxu0 0
        %2012 = vmatpush2.bf16.msra.mxu0 %v1602
        %2013 = vmatprep.mubr.bf16.mxu0 %v1157
        %2014 = vmatmul.mubr.bf16.gmra.mxu0 %v1156
        %v2015 = vpop.f32.mrf.mxu0
        %v2016 = vadd.f32 %v1919, %v2015
        %v2017 = vpop.f32.mrf.mxu0
        %v2018 = vpop.f32.mrf.mxu0
        %v2019 = vadd.f32 %v1922, %v2018
        %v2020 = vpop.f32.mrf.mxu0
        %2021 = vmatprep.mubr.bf16.mxu0 %v1163
        %2022 = vmatmul.mubr.bf16.gmra.mxu0 %v1162
        %v2023 = vpop.f32.mrf.mxu0
        %v2024 = vadd.f32 %v1927, %v2023
        %v2025 = vpop.f32.mrf.mxu0
        %v2026 = vpop.f32.mrf.mxu0
        %v2027 = vadd.f32 %v1930, %v2026
        %v2028 = vpop.f32.mrf.mxu0
        %2029 = vmatprep.mubr.bf16.mxu0 %v1169
        %2030 = vmatmul.mubr.bf16.gmra.mxu0 %v1168
        %v2031 = vpop.f32.mrf.mxu0
        %v2032 = vadd.f32 %v1935, %v2031
        %v2033 = vpop.f32.mrf.mxu0
        %v2034 = vpop.f32.mrf.mxu0
        %v2035 = vadd.f32 %v1938, %v2034
        %v2036 = vpop.f32.mrf.mxu0
        %2037 = vmatprep.mubr.bf16.mxu0 %v1175
        %2038 = vmatmul.mubr.bf16.gmra.mxu0 %v1174
        %v2039 = vpop.f32.mrf.mxu0
        %v2040 = vadd.f32 %v1943, %v2039
        %v2041 = vpop.f32.mrf.mxu0
        %v2042 = vpop.f32.mrf.mxu0
        %v2043 = vadd.f32 %v1946, %v2042
        %v2044 = vpop.f32.mrf.mxu0
        %2045 = vmatprep.mubr.bf16.mxu0 %v1184
        %2046 = vmatmul.mubr.bf16.gmra.mxu0 %v1183
        %v2047 = vpop.f32.mrf.mxu0
        %v2048 = vadd.f32 %v1951, %v2047
        %v2049 = vpop.f32.mrf.mxu0
        %v2050 = vpop.f32.mrf.mxu0
        %v2051 = vadd.f32 %v1954, %v2050
        %v2052 = vpop.f32.mrf.mxu0
        %2053 = vmatprep.mubr.bf16.mxu0 %v1190
        %2054 = vmatmul.mubr.bf16.gmra.mxu0 %v1189
        %v2055 = vpop.f32.mrf.mxu0
        %v2056 = vadd.f32 %v1959, %v2055
        %v2057 = vpop.f32.mrf.mxu0
        %v2058 = vpop.f32.mrf.mxu0
        %v2059 = vadd.f32 %v1962, %v2058
        %v2060 = vpop.f32.mrf.mxu0
        %2061 = vmatprep.mubr.bf16.mxu0 %v1196
        %2062 = vmatmul.mubr.bf16.gmra.mxu0 %v1195
        %v2063 = vpop.f32.mrf.mxu0
        %v2064 = vadd.f32 %v1967, %v2063
        %v2065 = vpop.f32.mrf.mxu0
        %v2066 = vpop.f32.mrf.mxu0
        %v2067 = vadd.f32 %v1970, %v2066
        %v2068 = vpop.f32.mrf.mxu0
        %2069 = vmatprep.mubr.bf16.mxu0 %v1202
        %2070 = vmatmul.mubr.bf16.gmra.mxu0 %v1201
        %v2071 = vpop.f32.mrf.mxu0
        %v2072 = vadd.f32 %v1975, %v2071
        %v2073 = vpop.f32.mrf.mxu0
        %v2074 = vpop.f32.mrf.mxu0
        %v2075 = vadd.f32 %v1978, %v2074
        %v2076 = vpop.f32.mrf.mxu0
        %2077 = vdwg.mxu0
        %2078 = vmatprep.subr.bf16.mxu0 0
        %2079 = vmatpush1.bf16.msra.mxu0 %v1617
        %2080 = vmatprep.subr.bf16.mxu0 0
        %2081 = vmatpush1.bf16.msra.mxu0 %v1616
        %2082 = vmatprep.subr.bf16.mxu0 0
        %2083 = vmatpush1.bf16.msra.mxu0 %v1615
        %2084 = vmatprep.subr.bf16.mxu0 0
        %2085 = vmatpush1.bf16.msra.mxu0 %v1614
        %2086 = vmatprep.subr.bf16.mxu0 0
        %2087 = vmatpush1.bf16.msra.mxu0 %v1613
        %2088 = vmatprep.subr.bf16.mxu0 0
        %2089 = vmatpush1.bf16.msra.mxu0 %v1612
        %2090 = vmatprep.subr.bf16.mxu0 0
        %2091 = vmatpush1.bf16.msra.mxu0 %v1611
        %2092 = vmatprep.subr.bf16.mxu0 0
        %2093 = vmatpush1.bf16.msra.mxu0 %v1610
        %2094 = vmatprep.subr.bf16.mxu0 0
        %2095 = vmatpush2.bf16.msra.mxu0 0
        %2096 = vmatprep.subr.bf16.mxu0 0
        %2097 = vmatpush2.bf16.msra.mxu0 0
        %2098 = vmatprep.subr.bf16.mxu0 0
        %2099 = vmatpush2.bf16.msra.mxu0 0
        %2100 = vmatprep.subr.bf16.mxu0 0
        %2101 = vmatpush2.bf16.msra.mxu0 0
        %2102 = vmatprep.subr.bf16.mxu0 0
        %2103 = vmatpush2.bf16.msra.mxu0 0
        %2104 = vmatprep.subr.bf16.mxu0 0
        %2105 = vmatpush2.bf16.msra.mxu0 0
        %2106 = vmatprep.subr.bf16.mxu0 0
        %2107 = vmatpush2.bf16.msra.mxu0 0
        %2108 = vmatprep.subr.bf16.mxu0 0
        %2109 = vmatpush2.bf16.msra.mxu0 0
        %2110 = vmatprep.mubr.bf16.mxu0 0
        %2111 = vmatmul.mubr.bf16.gmra.mxu0 %v1158
        %v2112 = vpop.f32.mrf.mxu0
        %v2113 = vadd.f32 %v2016, %v2112
        %v2114 = vpop.f32.mrf.mxu0
        %v2115 = vpop.f32.mrf.mxu0
        %v2116 = vadd.f32 %v2019, %v2115
        %v2117 = vpop.f32.mrf.mxu0
        %2118 = vmatprep.mubr.bf16.mxu0 0
        %2119 = vmatmul.mubr.bf16.gmra.mxu0 %v1164
        %v2120 = vpop.f32.mrf.mxu0
        %v2121 = vadd.f32 %v2024, %v2120
        %v2122 = vpop.f32.mrf.mxu0
        %v2123 = vpop.f32.mrf.mxu0
        %v2124 = vadd.f32 %v2027, %v2123
        %v2125 = vpop.f32.mrf.mxu0
        %2126 = vmatprep.mubr.bf16.mxu0 0
        %2127 = vmatmul.mubr.bf16.gmra.mxu0 %v1170
        %v2128 = vpop.f32.mrf.mxu0
        %v2129 = vadd.f32 %v2032, %v2128
        %v2130 = vpop.f32.mrf.mxu0
        %v2131 = vpop.f32.mrf.mxu0
        %v2132 = vadd.f32 %v2035, %v2131
        %v2133 = vpop.f32.mrf.mxu0
        %2134 = vmatprep.mubr.bf16.mxu0 0
        %2135 = vmatmul.mubr.bf16.gmra.mxu0 %v1176
        %v2136 = vpop.f32.mrf.mxu0
        %v2137 = vadd.f32 %v2040, %v2136
        %v2138 = vpop.f32.mrf.mxu0
        %v2139 = vpop.f32.mrf.mxu0
        %v2140 = vadd.f32 %v2043, %v2139
        %v2141 = vpop.f32.mrf.mxu0
        %2142 = vmatprep.mubr.bf16.mxu0 0
        %2143 = vmatmul.mubr.bf16.gmra.mxu0 %v1185
        %v2144 = vpop.f32.mrf.mxu0
        %v2145 = vadd.f32 %v2048, %v2144
        %v2146 = vpop.f32.mrf.mxu0
        %v2147 = vpop.f32.mrf.mxu0
        %v2148 = vadd.f32 %v2051, %v2147
        %v2149 = vpop.f32.mrf.mxu0
        %2150 = vmatprep.mubr.bf16.mxu0 0
        %2151 = vmatmul.mubr.bf16.gmra.mxu0 %v1191
        %v2152 = vpop.f32.mrf.mxu0
        %v2153 = vadd.f32 %v2056, %v2152
        %v2154 = vpop.f32.mrf.mxu0
        %v2155 = vpop.f32.mrf.mxu0
        %v2156 = vadd.f32 %v2059, %v2155
        %v2157 = vpop.f32.mrf.mxu0
        %2158 = vmatprep.mubr.bf16.mxu0 0
        %2159 = vmatmul.mubr.bf16.gmra.mxu0 %v1197
        %v2160 = vpop.f32.mrf.mxu0
        %v2161 = vadd.f32 %v2064, %v2160
        %v2162 = vpop.f32.mrf.mxu0
        %v2163 = vpop.f32.mrf.mxu0
        %v2164 = vadd.f32 %v2067, %v2163
        %v2165 = vpop.f32.mrf.mxu0
        %2166 = vmatprep.mubr.bf16.mxu0 0
        %2167 = vmatmul.mubr.bf16.gmra.mxu0 %v1203
        %v2168 = vpop.f32.mrf.mxu0
        %v2169 = vadd.f32 %v2072, %v2168
        %v2170 = vpop.f32.mrf.mxu0
        %v2171 = vpop.f32.mrf.mxu0
        %v2172 = vadd.f32 %v2075, %v2171
        %v2173 = vpop.f32.mrf.mxu0
        %2174 = vdwg.mxu0
        %v2175 = vld [vmem:[%s5] sm:$0x1]
        %v2176 = vld [vmem:[%s6] sm:$0x1]
        %v2177 = vadd.f32 %v2113, %v2116
        %v2178 = vadd.f32 %v2177, %v2121
        %v2179 = vadd.f32 %v2178, %v2124
        %v2180 = vadd.f32 %v2179, %v2129
        %v2181 = vadd.f32 %v2180, %v2132
        %v2182 = vadd.f32 %v2181, %v2137
        %v2183 = vadd.f32 %v2182, %v2140
        %v2184 = vrot.slane %v2183, 4
        %v2185 = vadd.f32 %v2183, %v2184
        %v2186 = vrot.slane %v2185, 2
        %v2187 = vadd.f32 %v2185, %v2186
        %v2188 = vrot.slane %v2187, 1
        %v2189 = vadd.f32 %v2187, %v2188
        %v2190 = vadd.f32 %v2145, %v2148
        %v2191 = vadd.f32 %v2190, %v2153
        %v2192 = vadd.f32 %v2191, %v2156
        %v2193 = vadd.f32 %v2192, %v2161
        %v2194 = vadd.f32 %v2193, %v2164
        %v2195 = vadd.f32 %v2194, %v2169
        %v2196 = vadd.f32 %v2195, %v2172
        %v2197 = vrot.slane %v2196, 4
        %v2198 = vadd.f32 %v2196, %v2197
        %v2199 = vrot.slane %v2198, 2
        %v2200 = vadd.f32 %v2198, %v2199
        %v2201 = vrot.slane %v2200, 1
        %v2202 = vadd.f32 %v2200, %v2201
        %v2203 = vmul.f32 %v2189, %v639
        %v2204 = vmul.f32 %v2202, %v639
        %v2205 = vmul.f32 %v2113, %v2113
        %v2206 = vmul.f32 %v2116, %v2116
        %v2207 = vmul.f32 %v2121, %v2121
        %v2208 = vmul.f32 %v2124, %v2124
        %v2209 = vmul.f32 %v2129, %v2129
        %v2210 = vmul.f32 %v2132, %v2132
        %v2211 = vmul.f32 %v2137, %v2137
        %v2212 = vmul.f32 %v2140, %v2140
        %v2213 = vmul.f32 %v2145, %v2145
        %v2214 = vmul.f32 %v2148, %v2148
        %v2215 = vmul.f32 %v2153, %v2153
        %v2216 = vmul.f32 %v2156, %v2156
        %v2217 = vmul.f32 %v2161, %v2161
        %v2218 = vmul.f32 %v2164, %v2164
        %v2219 = vmul.f32 %v2169, %v2169
        %v2220 = vmul.f32 %v2172, %v2172
        %v2221 = vadd.f32 %v2205, %v2206
        %v2222 = vadd.f32 %v2221, %v2207
        %v2223 = vadd.f32 %v2222, %v2208
        %v2224 = vadd.f32 %v2223, %v2209
        %v2225 = vadd.f32 %v2224, %v2210
        %v2226 = vadd.f32 %v2225, %v2211
        %v2227 = vadd.f32 %v2226, %v2212
        %v2228 = vrot.slane %v2227, 4
        %v2229 = vadd.f32 %v2227, %v2228
        %v2230 = vrot.slane %v2229, 2
        %v2231 = vadd.f32 %v2229, %v2230
        %v2232 = vrot.slane %v2231, 1
        %v2233 = vadd.f32 %v2231, %v2232
        %v2234 = vadd.f32 %v2213, %v2214
        %v2235 = vadd.f32 %v2234, %v2215
        %v2236 = vadd.f32 %v2235, %v2216
        %v2237 = vadd.f32 %v2236, %v2217
        %v2238 = vadd.f32 %v2237, %v2218
        %v2239 = vadd.f32 %v2238, %v2219
        %v2240 = vadd.f32 %v2239, %v2220
        %v2241 = vrot.slane %v2240, 4
        %v2242 = vadd.f32 %v2240, %v2241
        %v2243 = vrot.slane %v2242, 2
        %v2244 = vadd.f32 %v2242, %v2243
        %v2245 = vrot.slane %v2244, 1
        %v2246 = vadd.f32 %v2244, %v2245
        %v2247 = vmul.f32 %v2233, %v639
        %v2248 = vmul.f32 %v2246, %v639
        %v2249 = vmul.f32 %v2203, %v2203
        %v2250 = vmul.f32 %v2204, %v2204
        %v2251 = vsub.f32 %v2247, %v2249
        %v2252 = vsub.f32 %v2248, %v2250
        %v2253 = vmax.f32 %v2251, 0.0
        %v2254 = vmax.f32 %v2252, 0.0
        %v2255 = vsub.f32 %v2113, %v2203
        %v2256 = vsub.f32 %v2116, %v2203
        %v2257 = vsub.f32 %v2121, %v2203
        %v2258 = vsub.f32 %v2124, %v2203
        %v2259 = vsub.f32 %v2129, %v2203
        %v2260 = vsub.f32 %v2132, %v2203
        %v2261 = vsub.f32 %v2137, %v2203
        %v2262 = vsub.f32 %v2140, %v2203
        %v2263 = vsub.f32 %v2145, %v2204
        %v2264 = vsub.f32 %v2148, %v2204
        %v2265 = vsub.f32 %v2153, %v2204
        %v2266 = vsub.f32 %v2156, %v2204
        %v2267 = vsub.f32 %v2161, %v2204
        %v2268 = vsub.f32 %v2164, %v2204
        %v2269 = vsub.f32 %v2169, %v2204
        %v2270 = vsub.f32 %v2172, %v2204
        %v2271 = vadd.f32 %v2253, 1e-05
        %v2272 = vadd.f32 %v2254, 1e-05
        %v2273 = vrsqrt.pop %v2271
        %v2274 = vrsqrt.pop %v2272
        %v2275 = vmul.f32 %v2255, %v2273
        %v2276 = vmul.f32 %v2256, %v2273
        %v2277 = vmul.f32 %v2257, %v2273
        %v2278 = vmul.f32 %v2258, %v2273
        %v2279 = vmul.f32 %v2259, %v2273
        %v2280 = vmul.f32 %v2260, %v2273
        %v2281 = vmul.f32 %v2261, %v2273
        %v2282 = vmul.f32 %v2262, %v2273
        %v2283 = vmul.f32 %v2263, %v2274
        %v2284 = vmul.f32 %v2264, %v2274
        %v2285 = vmul.f32 %v2265, %v2274
        %v2286 = vmul.f32 %v2266, %v2274
        %v2287 = vmul.f32 %v2267, %v2274
        %v2288 = vmul.f32 %v2268, %v2274
        %v2289 = vmul.f32 %v2269, %v2274
        %v2290 = vmul.f32 %v2270, %v2274
        %v2292 = vlaneseq
        %v2293 = vshrl.u32 %v2292, 7
        %v2294 = vsub.s32 0, %v2293
        %v2295 = vrot.slane %v2175, %v2294
        %v2297 = vmul.f32 %v2275, %v2295
        %v2298 = vmul.f32 %v2276, %v2295
        %v2299 = vmul.f32 %v2277, %v2295
        %v2300 = vmul.f32 %v2278, %v2295
        %v2301 = vmul.f32 %v2279, %v2295
        %v2302 = vmul.f32 %v2280, %v2295
        %v2303 = vmul.f32 %v2281, %v2295
        %v2304 = vmul.f32 %v2282, %v2295
        %v2305 = vmul.f32 %v2283, %v2295
        %v2306 = vmul.f32 %v2284, %v2295
        %v2307 = vmul.f32 %v2285, %v2295
        %v2308 = vmul.f32 %v2286, %v2295
        %v2309 = vmul.f32 %v2287, %v2295
        %v2310 = vmul.f32 %v2288, %v2295
        %v2311 = vmul.f32 %v2289, %v2295
        %v2312 = vmul.f32 %v2290, %v2295
        %v2314 = vlaneseq
        %v2315 = vshrl.u32 %v2314, 7
        %v2316 = vsub.s32 0, %v2315
        %v2317 = vrot.slane %v2176, %v2316
        %v2319 = vadd.f32 %v2297, %v2317
        %v2320 = vadd.f32 %v2298, %v2317
        %v2321 = vadd.f32 %v2299, %v2317
        %v2322 = vadd.f32 %v2300, %v2317
        %v2323 = vadd.f32 %v2301, %v2317
        %v2324 = vadd.f32 %v2302, %v2317
        %v2325 = vadd.f32 %v2303, %v2317
        %v2326 = vadd.f32 %v2304, %v2317
        %v2327 = vadd.f32 %v2305, %v2317
        %v2328 = vadd.f32 %v2306, %v2317
        %v2329 = vadd.f32 %v2307, %v2317
        %v2330 = vadd.f32 %v2308, %v2317
        %v2331 = vadd.f32 %v2309, %v2317
        %v2332 = vadd.f32 %v2310, %v2317
        %v2333 = vadd.f32 %v2311, %v2317
        %v2334 = vadd.f32 %v2312, %v2317
        %v2335 = vmax.f32 %v2319, 0.0
        %v2336 = vmax.f32 %v2320, 0.0
        %v2337 = vmax.f32 %v2321, 0.0
        %v2338 = vmax.f32 %v2322, 0.0
        %v2339 = vmax.f32 %v2323, 0.0
        %v2340 = vmax.f32 %v2324, 0.0
        %v2341 = vmax.f32 %v2325, 0.0
        %v2342 = vmax.f32 %v2326, 0.0
        %v2343 = vmax.f32 %v2327, 0.0
        %v2344 = vmax.f32 %v2328, 0.0
        %v2345 = vmax.f32 %v2329, 0.0
        %v2346 = vmax.f32 %v2330, 0.0
        %v2347 = vmax.f32 %v2331, 0.0
        %v2348 = vmax.f32 %v2332, 0.0
        %v2349 = vmax.f32 %v2333, 0.0
        %v2350 = vmax.f32 %v2334, 0.0
        %v2351 = vpack.c.bf16 %v2336, %v2335
        %v2352 = vpack.c.bf16 %v2338, %v2337
        %v2353 = vpack.c.bf16 %v2340, %v2339
        %v2354 = vpack.c.bf16 %v2342, %v2341
        %v2355 = vpack.c.bf16 %v2344, %v2343
        %v2356 = vpack.c.bf16 %v2346, %v2345
        %v2357 = vpack.c.bf16 %v2348, %v2347
        %v2358 = vpack.c.bf16 %v2350, %v2349
        %v2359 = vld [vmem:[#allocation8] sm:$0xf]
        %v2360 = vld [vmem:[#allocation8 + $0x4] sm:$0xf]
        %v2361 = vld [vmem:[#allocation8 + $0x8] sm:$0xf]
        %v2362 = vld [vmem:[#allocation8 + $0xc] sm:$0xf]
        %v2363 = vld [vmem:[#allocation8 + $0x10] sm:$0xf]
        %v2364 = vld [vmem:[#allocation8 + $0x14] sm:$0xf]
        %v2365 = vld [vmem:[#allocation8 + $0x18] sm:$0xf]
        %v2366 = vld [vmem:[#allocation8 + $0x1c] sm:$0xf]
        %v2367 = vld [vmem:[#allocation8 + $0x20] sm:$0xf]
        %v2368 = vld [vmem:[#allocation8 + $0x24] sm:$0xf]
        %v2369 = vld [vmem:[#allocation8 + $0x28] sm:$0xf]
        %v2370 = vld [vmem:[#allocation8 + $0x2c] sm:$0xf]
        %v2371 = vld [vmem:[#allocation8 + $0x30] sm:$0xf]
        %v2372 = vld [vmem:[#allocation8 + $0x34] sm:$0xf]
        %v2373 = vld [vmem:[#allocation8 + $0x38] sm:$0xf]
        %v2374 = vld [vmem:[#allocation8 + $0x3c] sm:$0xf]
        %v2391 = vunpack.c.l.b16 %v2359
        %v2392 = vunpack.c.l.b16 %v2360
        %v2393 = vunpack.c.l.b16 %v2361
        %v2394 = vunpack.c.l.b16 %v2362
        %v2395 = vunpack.c.l.b16 %v2363
        %v2396 = vunpack.c.l.b16 %v2364
        %v2397 = vunpack.c.l.b16 %v2365
        %v2398 = vunpack.c.l.b16 %v2366
        %v2399 = vunpack.c.l.b16 %v2367
        %v2400 = vunpack.c.l.b16 %v2368
        %v2401 = vunpack.c.l.b16 %v2369
        %v2402 = vunpack.c.l.b16 %v2370
        %v2403 = vunpack.c.l.b16 %v2371
        %v2404 = vunpack.c.l.b16 %v2372
        %v2405 = vunpack.c.l.b16 %v2373
        %v2406 = vunpack.c.l.b16 %v2374
        %v2407 = vpack.c.b16 %v2392, %v2391
        %v2408 = vpack.c.b16 %v2394, %v2393
        %v2409 = vpack.c.b16 %v2396, %v2395
        %v2410 = vpack.c.b16 %v2398, %v2397
        %v2411 = vpack.c.b16 %v2400, %v2399
        %v2412 = vpack.c.b16 %v2402, %v2401
        %v2413 = vpack.c.b16 %v2404, %v2403
        %v2414 = vpack.c.b16 %v2406, %v2405
        %2423 = vmatprep.subr.bf16.mxu0 0
        %2424 = vmatpush1.bf16.msra.mxu0 %v2414
        %2425 = vmatprep.subr.bf16.mxu0 0
        %2426 = vmatpush1.bf16.msra.mxu0 %v2413
        %2427 = vmatprep.subr.bf16.mxu0 0
        %2428 = vmatpush1.bf16.msra.mxu0 %v2412
        %2429 = vmatprep.subr.bf16.mxu0 0
        %2430 = vmatpush1.bf16.msra.mxu0 %v2411
        %2431 = vmatprep.subr.bf16.mxu0 0
        %2432 = vmatpush1.bf16.msra.mxu0 %v2410
        %2433 = vmatprep.subr.bf16.mxu0 0
        %2434 = vmatpush1.bf16.msra.mxu0 %v2409
        %2435 = vmatprep.subr.bf16.mxu0 0
        %2436 = vmatpush1.bf16.msra.mxu0 %v2408
        %2437 = vmatprep.subr.bf16.mxu0 0
        %2438 = vmatpush1.bf16.msra.mxu0 %v2407
        %2439 = vmatprep.subr.bf16.mxu0 0
        %2440 = vmatpush2.bf16.msra.mxu0 0
        %2441 = vmatprep.subr.bf16.mxu0 0
        %2442 = vmatpush2.bf16.msra.mxu0 0
        %2443 = vmatprep.subr.bf16.mxu0 0
        %2444 = vmatpush2.bf16.msra.mxu0 0
        %2445 = vmatprep.subr.bf16.mxu0 0
        %2446 = vmatpush2.bf16.msra.mxu0 0
        %2447 = vmatprep.subr.bf16.mxu0 0
        %2448 = vmatpush2.bf16.msra.mxu0 0
        %2449 = vmatprep.subr.bf16.mxu0 0
        %2450 = vmatpush2.bf16.msra.mxu0 0
        %2451 = vmatprep.subr.bf16.mxu0 0
        %2452 = vmatpush2.bf16.msra.mxu0 0
        %2453 = vmatprep.subr.bf16.mxu0 0
        %2454 = vmatpush2.bf16.msra.mxu0 0
        %2455 = vmatprep.mubr.bf16.mxu0 0
        %2456 = vmatmul.mubr.bf16.gmra.mxu0 %v2351
        %v2457 = vpop.f32.mrf.mxu0
        %v2458 = vadd.f32 0.0, %v2457
        %v2459 = vpop.f32.mrf.mxu0
        %v2460 = vpop.f32.mrf.mxu0
        %v2461 = vadd.f32 0.0, %v2460
        %v2462 = vpop.f32.mrf.mxu0
        %2463 = vmatprep.mubr.bf16.mxu0 0
        %2464 = vmatmul.mubr.bf16.gmra.mxu0 %v2352
        %v2465 = vpop.f32.mrf.mxu0
        %v2466 = vadd.f32 0.0, %v2465
        %v2467 = vpop.f32.mrf.mxu0
        %v2468 = vpop.f32.mrf.mxu0
        %v2469 = vadd.f32 0.0, %v2468
        %v2470 = vpop.f32.mrf.mxu0
        %2471 = vmatprep.mubr.bf16.mxu0 0
        %2472 = vmatmul.mubr.bf16.gmra.mxu0 %v2353
        %v2473 = vpop.f32.mrf.mxu0
        %v2474 = vadd.f32 0.0, %v2473
        %v2475 = vpop.f32.mrf.mxu0
        %v2476 = vpop.f32.mrf.mxu0
        %v2477 = vadd.f32 0.0, %v2476
        %v2478 = vpop.f32.mrf.mxu0
        %2479 = vmatprep.mubr.bf16.mxu0 0
        %2480 = vmatmul.mubr.bf16.gmra.mxu0 %v2354
        %v2481 = vpop.f32.mrf.mxu0
        %v2482 = vadd.f32 0.0, %v2481
        %v2483 = vpop.f32.mrf.mxu0
        %v2484 = vpop.f32.mrf.mxu0
        %v2485 = vadd.f32 0.0, %v2484
        %v2486 = vpop.f32.mrf.mxu0
        %2487 = vmatprep.mubr.bf16.mxu0 0
        %2488 = vmatmul.mubr.bf16.gmra.mxu0 %v2355
        %v2489 = vpop.f32.mrf.mxu0
        %v2490 = vadd.f32 0.0, %v2489
        %v2491 = vpop.f32.mrf.mxu0
        %v2492 = vpop.f32.mrf.mxu0
        %v2493 = vadd.f32 0.0, %v2492
        %v2494 = vpop.f32.mrf.mxu0
        %2495 = vmatprep.mubr.bf16.mxu0 0
        %2496 = vmatmul.mubr.bf16.gmra.mxu0 %v2356
        %v2497 = vpop.f32.mrf.mxu0
        %v2498 = vadd.f32 0.0, %v2497
        %v2499 = vpop.f32.mrf.mxu0
        %v2500 = vpop.f32.mrf.mxu0
        %v2501 = vadd.f32 0.0, %v2500
        %v2502 = vpop.f32.mrf.mxu0
        %2503 = vmatprep.mubr.bf16.mxu0 0
        %2504 = vmatmul.mubr.bf16.gmra.mxu0 %v2357
        %v2505 = vpop.f32.mrf.mxu0
        %v2506 = vadd.f32 0.0, %v2505
        %v2507 = vpop.f32.mrf.mxu0
        %v2508 = vpop.f32.mrf.mxu0
        %v2509 = vadd.f32 0.0, %v2508
        %v2510 = vpop.f32.mrf.mxu0
        %2511 = vmatprep.mubr.bf16.mxu0 0
        %2512 = vmatmul.mubr.bf16.gmra.mxu0 %v2358
        %v2513 = vpop.f32.mrf.mxu0
        %v2514 = vadd.f32 0.0, %v2513
        %v2515 = vpop.f32.mrf.mxu0
        %v2516 = vpop.f32.mrf.mxu0
        %v2517 = vadd.f32 0.0, %v2516
        %v2518 = vpop.f32.mrf.mxu0
        %2519 = vdwg.mxu0
        %v2520 = vld [vmem:[%s8] sm:$0x1]
        %v2521 = vld [vmem:[%s9] sm:$0x1]
        %v2522 = vadd.f32 %v2458, %v2461
        %v2523 = vadd.f32 %v2522, %v2466
        %v2524 = vadd.f32 %v2523, %v2469
        %v2525 = vadd.f32 %v2524, %v2474
        %v2526 = vadd.f32 %v2525, %v2477
        %v2527 = vadd.f32 %v2526, %v2482
        %v2528 = vadd.f32 %v2527, %v2485
        %v2529 = vrot.slane %v2528, 4
        %v2530 = vadd.f32 %v2528, %v2529
        %v2531 = vrot.slane %v2530, 2
        %v2532 = vadd.f32 %v2530, %v2531
        %v2533 = vrot.slane %v2532, 1
        %v2534 = vadd.f32 %v2532, %v2533
        %v2535 = vadd.f32 %v2490, %v2493
        %v2536 = vadd.f32 %v2535, %v2498
        %v2537 = vadd.f32 %v2536, %v2501
        %v2538 = vadd.f32 %v2537, %v2506
        %v2539 = vadd.f32 %v2538, %v2509
        %v2540 = vadd.f32 %v2539, %v2514
        %v2541 = vadd.f32 %v2540, %v2517
        %v2542 = vrot.slane %v2541, 4
        %v2543 = vadd.f32 %v2541, %v2542
        %v2544 = vrot.slane %v2543, 2
        %v2545 = vadd.f32 %v2543, %v2544
        %v2546 = vrot.slane %v2545, 1
        %v2547 = vadd.f32 %v2545, %v2546
        %v2548 = vmul.f32 %v2534, %v639
        %v2549 = vmul.f32 %v2547, %v639
        %v2550 = vmul.f32 %v2458, %v2458
        %v2551 = vmul.f32 %v2461, %v2461
        %v2552 = vmul.f32 %v2466, %v2466
        %v2553 = vmul.f32 %v2469, %v2469
        %v2554 = vmul.f32 %v2474, %v2474
        %v2555 = vmul.f32 %v2477, %v2477
        %v2556 = vmul.f32 %v2482, %v2482
        %v2557 = vmul.f32 %v2485, %v2485
        %v2558 = vmul.f32 %v2490, %v2490
        %v2559 = vmul.f32 %v2493, %v2493
        %v2560 = vmul.f32 %v2498, %v2498
        %v2561 = vmul.f32 %v2501, %v2501
        %v2562 = vmul.f32 %v2506, %v2506
        %v2563 = vmul.f32 %v2509, %v2509
        %v2564 = vmul.f32 %v2514, %v2514
        %v2565 = vmul.f32 %v2517, %v2517
        %v2566 = vadd.f32 %v2550, %v2551
        %v2567 = vadd.f32 %v2566, %v2552
        %v2568 = vadd.f32 %v2567, %v2553
        %v2569 = vadd.f32 %v2568, %v2554
        %v2570 = vadd.f32 %v2569, %v2555
        %v2571 = vadd.f32 %v2570, %v2556
        %v2572 = vadd.f32 %v2571, %v2557
        %v2573 = vrot.slane %v2572, 4
        %v2574 = vadd.f32 %v2572, %v2573
        %v2575 = vrot.slane %v2574, 2
        %v2576 = vadd.f32 %v2574, %v2575
        %v2577 = vrot.slane %v2576, 1
        %v2578 = vadd.f32 %v2576, %v2577
        %v2579 = vadd.f32 %v2558, %v2559
        %v2580 = vadd.f32 %v2579, %v2560
        %v2581 = vadd.f32 %v2580, %v2561
        %v2582 = vadd.f32 %v2581, %v2562
        %v2583 = vadd.f32 %v2582, %v2563
        %v2584 = vadd.f32 %v2583, %v2564
        %v2585 = vadd.f32 %v2584, %v2565
        %v2586 = vrot.slane %v2585, 4
        %v2587 = vadd.f32 %v2585, %v2586
        %v2588 = vrot.slane %v2587, 2
        %v2589 = vadd.f32 %v2587, %v2588
        %v2590 = vrot.slane %v2589, 1
        %v2591 = vadd.f32 %v2589, %v2590
        %v2592 = vmul.f32 %v2578, %v639
        %v2593 = vmul.f32 %v2591, %v639
        %v2594 = vmul.f32 %v2548, %v2548
        %v2595 = vmul.f32 %v2549, %v2549
        %v2596 = vsub.f32 %v2592, %v2594
        %v2597 = vsub.f32 %v2593, %v2595
        %v2598 = vmax.f32 %v2596, 0.0
        %v2599 = vmax.f32 %v2597, 0.0
        %v2600 = vsub.f32 %v2458, %v2548
        %v2601 = vsub.f32 %v2461, %v2548
        %v2602 = vsub.f32 %v2466, %v2548
        %v2603 = vsub.f32 %v2469, %v2548
        %v2604 = vsub.f32 %v2474, %v2548
        %v2605 = vsub.f32 %v2477, %v2548
        %v2606 = vsub.f32 %v2482, %v2548
        %v2607 = vsub.f32 %v2485, %v2548
        %v2608 = vsub.f32 %v2490, %v2549
        %v2609 = vsub.f32 %v2493, %v2549
        %v2610 = vsub.f32 %v2498, %v2549
        %v2611 = vsub.f32 %v2501, %v2549
        %v2612 = vsub.f32 %v2506, %v2549
        %v2613 = vsub.f32 %v2509, %v2549
        %v2614 = vsub.f32 %v2514, %v2549
        %v2615 = vsub.f32 %v2517, %v2549
        %v2616 = vadd.f32 %v2598, 1e-05
        %v2617 = vadd.f32 %v2599, 1e-05
        %v2618 = vrsqrt.pop %v2616
        %v2619 = vrsqrt.pop %v2617
        %v2620 = vmul.f32 %v2600, %v2618
        %v2621 = vmul.f32 %v2601, %v2618
        %v2622 = vmul.f32 %v2602, %v2618
        %v2623 = vmul.f32 %v2603, %v2618
        %v2624 = vmul.f32 %v2604, %v2618
        %v2625 = vmul.f32 %v2605, %v2618
        %v2626 = vmul.f32 %v2606, %v2618
        %v2627 = vmul.f32 %v2607, %v2618
        %v2628 = vmul.f32 %v2608, %v2619
        %v2629 = vmul.f32 %v2609, %v2619
        %v2630 = vmul.f32 %v2610, %v2619
        %v2631 = vmul.f32 %v2611, %v2619
        %v2632 = vmul.f32 %v2612, %v2619
        %v2633 = vmul.f32 %v2613, %v2619
        %v2634 = vmul.f32 %v2614, %v2619
        %v2635 = vmul.f32 %v2615, %v2619
        %v2637 = vlaneseq
        %v2638 = vshrl.u32 %v2637, 7
        %v2639 = vsub.s32 0, %v2638
        %v2640 = vrot.slane %v2520, %v2639
        %v2642 = vmul.f32 %v2620, %v2640
        %v2643 = vmul.f32 %v2621, %v2640
        %v2644 = vmul.f32 %v2622, %v2640
        %v2645 = vmul.f32 %v2623, %v2640
        %v2646 = vmul.f32 %v2624, %v2640
        %v2647 = vmul.f32 %v2625, %v2640
        %v2648 = vmul.f32 %v2626, %v2640
        %v2649 = vmul.f32 %v2627, %v2640
        %v2650 = vmul.f32 %v2628, %v2640
        %v2651 = vmul.f32 %v2629, %v2640
        %v2652 = vmul.f32 %v2630, %v2640
        %v2653 = vmul.f32 %v2631, %v2640
        %v2654 = vmul.f32 %v2632, %v2640
        %v2655 = vmul.f32 %v2633, %v2640
        %v2656 = vmul.f32 %v2634, %v2640
        %v2657 = vmul.f32 %v2635, %v2640
        %v2659 = vlaneseq
        %v2660 = vshrl.u32 %v2659, 7
        %v2661 = vsub.s32 0, %v2660
        %v2662 = vrot.slane %v2521, %v2661
        %v2664 = vadd.f32 %v2642, %v2662
        %v2665 = vadd.f32 %v2643, %v2662
        %v2666 = vadd.f32 %v2644, %v2662
        %v2667 = vadd.f32 %v2645, %v2662
        %v2668 = vadd.f32 %v2646, %v2662
        %v2669 = vadd.f32 %v2647, %v2662
        %v2670 = vadd.f32 %v2648, %v2662
        %v2671 = vadd.f32 %v2649, %v2662
        %v2672 = vadd.f32 %v2650, %v2662
        %v2673 = vadd.f32 %v2651, %v2662
        %v2674 = vadd.f32 %v2652, %v2662
        %v2675 = vadd.f32 %v2653, %v2662
        %v2676 = vadd.f32 %v2654, %v2662
        %v2677 = vadd.f32 %v2655, %v2662
        %v2678 = vadd.f32 %v2656, %v2662
        %v2679 = vadd.f32 %v2657, %v2662
        %v2680 = vadd.f32 %v2664, %v426
        %v2681 = vadd.f32 %v2665, %v427
        %v2682 = vadd.f32 %v2666, %v428
        %v2683 = vadd.f32 %v2667, %v429
        %v2684 = vadd.f32 %v2668, %v430
        %v2685 = vadd.f32 %v2669, %v431
        %v2686 = vadd.f32 %v2670, %v432
        %v2687 = vadd.f32 %v2671, %v433
        %v2688 = vadd.f32 %v2672, %v434
        %v2689 = vadd.f32 %v2673, %v435
        %v2690 = vadd.f32 %v2674, %v436
        %v2691 = vadd.f32 %v2675, %v437
        %v2692 = vadd.f32 %v2676, %v438
        %v2693 = vadd.f32 %v2677, %v439
        %v2694 = vadd.f32 %v2678, %v440
        %v2695 = vadd.f32 %v2679, %v441
        %v2696 = vmax.f32 %v2680, 0.0
        %v2697 = vmax.f32 %v2681, 0.0
        %v2698 = vmax.f32 %v2682, 0.0
        %v2699 = vmax.f32 %v2683, 0.0
        %v2700 = vmax.f32 %v2684, 0.0
        %v2701 = vmax.f32 %v2685, 0.0
        %v2702 = vmax.f32 %v2686, 0.0
        %v2703 = vmax.f32 %v2687, 0.0
        %v2704 = vmax.f32 %v2688, 0.0
        %v2705 = vmax.f32 %v2689, 0.0
        %v2706 = vmax.f32 %v2690, 0.0
        %v2707 = vmax.f32 %v2691, 0.0
        %v2708 = vmax.f32 %v2692, 0.0
        %v2709 = vmax.f32 %v2693, 0.0
        %v2710 = vmax.f32 %v2694, 0.0
        %v2711 = vmax.f32 %v2695, 0.0
        %2712 = vst [vmem:[%s422] sm:$0xff] %v2696
        %2713 = vst [vmem:[%s422 + $0x8] sm:$0xff] %v2697
        %2714 = vst [vmem:[%s422 + $0x10] sm:$0xff] %v2698
        %2715 = vst [vmem:[%s422 + $0x18] sm:$0xff] %v2699
        %2716 = vst [vmem:[%s422 + $0x20] sm:$0xff] %v2700
        %2717 = vst [vmem:[%s422 + $0x28] sm:$0xff] %v2701
        %2718 = vst [vmem:[%s422 + $0x30] sm:$0xff] %v2702
        %2719 = vst [vmem:[%s422 + $0x38] sm:$0xff] %v2703
        %2720 = vst [vmem:[%s422 + $0x40] sm:$0xff] %v2704
        %2721 = vst [vmem:[%s422 + $0x48] sm:$0xff] %v2705
        %2722 = vst [vmem:[%s422 + $0x50] sm:$0xff] %v2706
        %2723 = vst [vmem:[%s422 + $0x58] sm:$0xff] %v2707
        %2724 = vst [vmem:[%s422 + $0x60] sm:$0xff] %v2708
        %2725 = vst [vmem:[%s422 + $0x68] sm:$0xff] %v2709
        %2726 = vst [vmem:[%s422 + $0x70] sm:$0xff] %v2710
        %2727 = vst [vmem:[%s422 + $0x78] sm:$0xff] %v2711
        %s2728 = sand.u32 %s252, 1
        %s2729 = scalar_lea.sflag [#allocation4], %s2728
        %s2730 = sand.u32 %s252, 1
        %s2731 = smul.addr %s2730, 128
        %s2732 = scalar_lea.vmem [#allocation10], %s2731
        // Predicated region
        $region77: #{tpu_custom_call.1} parent=59 // pred_check
          %p2733 = pneg %p262
        $region78: #{tpu_custom_call.1} parent=59 // pred_check_branch
          %2735 = sbr.rel (%p2733) target = $region80
        $region79: #{tpu_custom_call.1} parent=59 // pred_region
          %s2736 = smul.u32 2, %s29
          %s2738 = ssub.s32 2048, 2048
          %2739 = vsyncadd %s2729, %s2738
          %s2740 = smul.addr %s2736, 8
          %s2741 = smul.addr %s2740, 128
          %s2742 = scalar_lea.hbm %s10, %s2741
          %s2743 = sshll.u32 %s2732, 4
          %s2744 = int_to_ptr.vmem [resolvable:$true] %s2743
          %2749 = dma.vmem_to_hbm [thread:$0]  %s2744, 2048, %s2742, %s2729, 128, 128, 8
        $region80: #{tpu_custom_call.1} parent=59 // pred_fallthru
          _
      $region60: #{tpu_custom_call.1} parent=5 // pred_fallthru
        _
      %p2750 = scmp.le.s32.totalorder 2, %s24
      // Predicated region
      $region81: #{tpu_custom_call.1} parent=5 // pred_check
        %p2751 = pneg %p2750
      $region82: #{tpu_custom_call.1} parent=5 // pred_check_branch
        %2753 = sbr.rel (%p2751) target = $region84
      $region83: #{tpu_custom_call.1} parent=5 // pred_region
        %s2754 = ssub.s32 %s24, 2
        // Predicated region
        $region85: #{tpu_custom_call.1} parent=83 // pred_check
          %p2755 = pneg %p268
        $region86: #{tpu_custom_call.1} parent=83 // pred_check_branch
          %2757 = sbr.rel (%p2755) target = $region88
        $region87: #{tpu_custom_call.1} parent=83 // pred_region
          %s2758 = sand.u32 %s253, 1
          %s2759 = scalar_lea.sflag [#allocation4], %s2758
          %s2760 = sand.u32 %s253, 1
          %s2761 = smul.addr %s2760, 128
          %s2762 = scalar_lea.vmem [#allocation10], %s2761
          %2763 = dma.done %s2759, 2048
        $region88: #{tpu_custom_call.1} parent=83 // pred_fallthru
          _
      $region84: #{tpu_custom_call.1} parent=5 // pred_fallthru
        _
    $region6: #{tpu_custom_call.1} parent=1 // loop_footer
      %s28 = sadd.s32 1, %s24
    $region7: #{tpu_custom_call.1} parent=1 // loop_footer_branch
      %23 = sbr.rel target = $region3
    $region8: #{tpu_custom_call.1} parent=1 // loop_exit
      _
    %2764 = vsyncpa [#allocation3], 1
    %s2765 = scalar_lea.sflag [#allocation3], 1
    %2766 = vsyncpa %s2765, 1
    %2767 = vsyncpa [#allocation6], 1
    %2768 = vsyncpa [#allocation9], 1
    %2769 = vsyncpa [#allocation4], 1
    %s2770 = scalar_lea.sflag [#allocation4], 1
    %2771 = vsyncpa %s2770, 1

</llo_original>
